<compile_context>
chip_gen: v6e
topology: v6e:2x2x1
jax: 0.10.0
libtpu: 0.0.40
codegen_flags: <defaults>
</compile_context>

<pallas_src>
import functools

import jax
import jax.numpy as jnp
from jax import lax
from jax.experimental import pallas as pl
from jax.experimental.pallas import tpu as pltpu


def _round_up(x, m):
    return (x + m - 1) // m * m


def _mlp_kernel(x_ref, w1_ref, b1_ref, w2_ref, b2_ref, w3_ref, b3_ref, o_ref,
                *, precision):
    # Fused hot path on one batch tile: 3 MXU matmuls + VPU bias/ReLU.
    cdt = x_ref.dtype

    h1 = jnp.dot(x_ref[...], w1_ref[...],
                 preferred_element_type=jnp.float32, precision=precision)
    h1 = jnp.maximum(h1 + b1_ref[...].astype(jnp.float32), 0.0).astype(cdt)

    h2 = jnp.dot(h1, w2_ref[...],
                 preferred_element_type=jnp.float32, precision=precision)
    h2 = jnp.maximum(h2 + b2_ref[...].astype(jnp.float32), 0.0).astype(cdt)

    y = jnp.dot(h2, w3_ref[...],
                preferred_element_type=jnp.float32, precision=precision)
    o_ref[...] = (y + b3_ref[...].astype(jnp.float32)).astype(o_ref.dtype)


@functools.partial(jax.jit,
                   static_argnames=("block_b", "xla_fallback_threshold"))
def inlier_decoder_forward(embeddings, w1, b1, w2, b2, w3, b3, *,
                           block_b=1024, xla_fallback_threshold=128):
    B, input_dim = embeddings.shape
    dim1 = w1.shape[1]
    dim2 = w2.shape[1]
    output_dim = w3.shape[1]
    out_dtype = embeddings.dtype

    # Exact f32 parity with the torch module; bf16 stays bf16 on the MXU.
    precision = (lax.Precision.HIGHEST
                 if embeddings.dtype == jnp.float32 else None)

    # Tiny-batch fallback: pallas_call launch overhead would dominate.
    if B < xla_fallback_threshold:
        h1 = jax.nn.relu(jnp.dot(embeddings, w1, precision=precision) + b1)
        h2 = jax.nn.relu(jnp.dot(h1, w2, precision=precision) + b2)
        return jnp.dot(h2, w3, precision=precision) + b3

    # --- pad only the (tiny) hidden dims to lane multiples; exact math ------
    d1_p = _round_up(dim1, 128)
    d2_p = _round_up(dim2, 128)

    def pad2(a, rows, cols):
        return jnp.pad(a, ((0, rows - a.shape[0]), (0, cols - a.shape[1])))

    w1p = pad2(w1, input_dim, d1_p)          # (input_dim, d1_p)
    w2p = pad2(w2, d1_p, d2_p)               # (d1_p, d2_p)
    w3p = pad2(w3, d2_p, output_dim)         # (d2_p, output_dim)
    b1p = jnp.pad(b1, (0, d1_p - dim1)).reshape(1, d1_p)
    b2p = jnp.pad(b2, (0, d2_p - dim2)).reshape(1, d2_p)
    b3p = b3.reshape(1, output_dim)

    # --- batch tiling: cdiv grid (ragged tail), >=2 steps for v7x megacore --
    itemsize = jnp.dtype(out_dtype).itemsize
    sublane = max(8, 32 // itemsize)          # f32:8, bf16:16, int8/fp8:32
    if B > block_b:
        bb = _round_up(block_b, sublane)
    elif B > 2 * sublane:
        bb = _round_up(pl.cdiv(B, 2), sublane)  # 2 steps -> both TCs busy
    else:
        bb = _round_up(B, sublane)
    grid = (pl.cdiv(B, bb),)

    # Advisory cost estimate from the bytes actually moved.
    flops = 2 * B * (input_dim * d1_p + d1_p * d2_p + d2_p * output_dim)
    w_bytes = itemsize * (input_dim * d1_p + d1_p
                          + d1_p * d2_p + d2_p
                          + d2_p * output_dim + output_dim)
    bytes_accessed = itemsize * B * (input_dim + output_dim) + w_bytes

    kernel = functools.partial(_mlp_kernel, precision=precision)

    return pl.pallas_call(
        kernel,
        out_shape=jax.ShapeDtypeStruct((B, output_dim), out_dtype),
        grid_spec=pltpu.PrefetchScalarGridSpec(
            num_scalar_prefetch=0,
            grid=grid,
            in_specs=[
                # batch tile of x at true width (full-dim exemption on lanes)
                pl.BlockSpec((bb, input_dim), lambda i: (i, 0)),
                # weights / biases: full arrays, same block every grid step
                pl.BlockSpec((input_dim, d1_p), lambda i: (0, 0)),
                pl.BlockSpec((1, d1_p), lambda i: (0, 0)),
                pl.BlockSpec((d1_p, d2_p), lambda i: (0, 0)),
                pl.BlockSpec((1, d2_p), lambda i: (0, 0)),
                pl.BlockSpec((d2_p, output_dim), lambda i: (0, 0)),
                pl.BlockSpec((1, output_dim), lambda i: (0, 0)),
            ],
            # output at true width: 8x less writeback than a 128-padded slab
            out_specs=pl.BlockSpec((bb, output_dim), lambda i: (i, 0)),
        ),
        compiler_params=pltpu.CompilerParams(
            dimension_semantics=("parallel",),
        ),
        cost_estimate=pl.CostEstimate(
            flops=flops, transcendentals=0, bytes_accessed=bytes_accessed
        ),
    )(embeddings, w1p, b1p, w2p, b2p, w3p, b3p)


def init_params(key, input_dim, dim1, dim2, output_dim, dtype=jnp.float32):
    """Init mimicking torch nn.Linear (uniform +/- 1/sqrt(fan_in)).

    Weights are stored as (in_dim, out_dim) — the transpose of torch's layout.
    """
    def linear(key, fan_in, fan_out):
        kw, kb = jax.random.split(key)
        bound = 1.0 / jnp.sqrt(fan_in)
        w = jax.random.uniform(kw, (fan_in, fan_out), dtype, -bound, bound)
        b = jax.random.uniform(kb, (fan_out,), dtype, -bound, bound)
        return w, b

    k1, k2, k3 = jax.random.split(key, 3)
    w1, b1 = linear(k1, input_dim, dim1)
    w2, b2 = linear(k2, dim1, dim2)
    w3, b3 = linear(k3, dim2, output_dim)
    return w1, b1, w2, b2, w3, b3


def reference_forward(x, w1, b1, w2, b2, w3, b3,
                      precision=lax.Precision.HIGHEST):
    h1 = jax.nn.relu(jnp.dot(x, w1, precision=precision) + b1)
    h2 = jax.nn.relu(jnp.dot(h1, w2, precision=precision) + b2)
    return jnp.dot(h2, w3, precision=precision) + b3


if __name__ == "__main__":
    # Small shapes consistent with the module's Linear stack.
    B = 16
    input_dim, dim1, dim2, output_dim = 32, 64, 48, 16

    key = jax.random.PRNGKey(0)
    k_x, k_p = jax.random.split(key)

    x = jax.random.normal(k_x, (B, input_dim), dtype=jnp.float32)
    params = init_params(k_p, input_dim, dim1, dim2, output_dim)

    # Force the Pallas path for the small-shape check (threshold=0).
    out = inlier_decoder_forward(x, *params, xla_fallback_threshold=0)
    out = jax.block_until_ready(out)
    ref = reference_forward(x, *params)
    assert out.shape == (B, output_dim)
    assert jnp.allclose(out, ref, atol=1e-5, rtol=1e-5), "mismatch vs reference"

    # Default small-batch fallback path (plain XLA) must match too.
    out_fb = jax.block_until_ready(inlier_decoder_forward(x, *params))
    assert jnp.allclose(out_fb, ref, atol=1e-5, rtol=1e-5), "mismatch (fallback)"

    # Ragged, larger batch: multi-step grid with a ragged last block.
    B2 = 777
    x2 = jax.random.normal(jax.random.PRNGKey(1), (B2, input_dim), jnp.float32)
    out2 = jax.block_until_ready(inlier_decoder_forward(x2, *params))
    ref2 = reference_forward(x2, *params)
    assert out2.shape == (B2, output_dim)
    assert jnp.allclose(out2, ref2, atol=1e-5, rtol=1e-5), "mismatch (ragged batch)"

    print("KERNEL_OK")
</pallas_src>

<mosaic_0001>
module attributes {stable_mosaic.version = 11 : i64} {
  func.func @_mlp_kernel(%arg0: i32, %arg1: memref<16x32xf32, #tpu.memory_space<vmem>>, %arg2: memref<32x128xf32, #tpu.memory_space<vmem>>, %arg3: memref<1x128xf32, #tpu.memory_space<vmem>>, %arg4: memref<128x128xf32, #tpu.memory_space<vmem>>, %arg5: memref<1x128xf32, #tpu.memory_space<vmem>>, %arg6: memref<128x16xf32, #tpu.memory_space<vmem>>, %arg7: memref<1x16xf32, #tpu.memory_space<vmem>>, %arg8: memref<16x16xf32, #tpu.memory_space<vmem>>) attributes {dimension_semantics = [#tpu.dimension_semantics<parallel>], iteration_bounds = array<i64: 1>, scalar_prefetch = 0 : i64, scratch_operands = 0 : i64, tpu.core_type = #tpu.core_type<tc>, window_params = [{transform_indices = @transform_0, window_bounds = array<i64: 16, 32>}, {pipeline_mode = #tpu.pipeline_mode<synchronous>, transform_indices = @transform_1, window_bounds = array<i64: 32, 128>}, {pipeline_mode = #tpu.pipeline_mode<synchronous>, transform_indices = @transform_2, window_bounds = array<i64: 1, 128>}, {pipeline_mode = #tpu.pipeline_mode<synchronous>, transform_indices = @transform_3, window_bounds = array<i64: 128, 128>}, {pipeline_mode = #tpu.pipeline_mode<synchronous>, transform_indices = @transform_4, window_bounds = array<i64: 1, 128>}, {pipeline_mode = #tpu.pipeline_mode<synchronous>, transform_indices = @transform_5, window_bounds = array<i64: 128, 16>}, {pipeline_mode = #tpu.pipeline_mode<synchronous>, transform_indices = @transform_6, window_bounds = array<i64: 1, 16>}, {transform_indices = @transform_7, window_bounds = array<i64: 16, 16>}]} {
    %c0 = arith.constant 0 : index
    %c0_0 = arith.constant 0 : index
    %0 = vector.load %arg1[%c0, %c0_0] : memref<16x32xf32, #tpu.memory_space<vmem>>, vector<16x32xf32>
    %c0_1 = arith.constant 0 : index
    %c0_2 = arith.constant 0 : index
    %1 = vector.load %arg2[%c0_1, %c0_2] : memref<32x128xf32, #tpu.memory_space<vmem>>, vector<32x128xf32>
    %cst = arith.constant dense<0.000000e+00> : vector<16x128xf32>
    %2 = tpu.matmul %0, %1, %cst {dimension_numbers = #tpu.dot_dimension_numbers<[1], [0], [0], [1], [0, 0, 1, 1], [], []>, precision = #tpu.contract_precision<fp32>} : vector<16x32xf32>, vector<32x128xf32>, vector<16x128xf32> -> vector<16x128xf32>
    %c0_3 = arith.constant 0 : index
    %c0_4 = arith.constant 0 : index
    %3 = vector.load %arg3[%c0_3, %c0_4] : memref<1x128xf32, #tpu.memory_space<vmem>>, vector<1x128xf32>
    %4 = vector.broadcast %3 : vector<1x128xf32> to vector<16x128xf32>
    %5 = arith.addf %2, %4 : vector<16x128xf32>
    %cst_5 = arith.constant 0.000000e+00 : f32
    %6 = vector.broadcast %cst_5 : f32 to vector<16x128xf32>
    %7 = arith.maximumf %5, %6 : vector<16x128xf32>
    %c0_6 = arith.constant 0 : index
    %c0_7 = arith.constant 0 : index
    %8 = vector.load %arg4[%c0_6, %c0_7] : memref<128x128xf32, #tpu.memory_space<vmem>>, vector<128x128xf32>
    %cst_8 = arith.constant dense<0.000000e+00> : vector<16x128xf32>
    %9 = tpu.matmul %7, %8, %cst_8 {dimension_numbers = #tpu.dot_dimension_numbers<[1], [0], [0], [1], [0, 0, 1, 1], [], []>, precision = #tpu.contract_precision<fp32>} : vector<16x128xf32>, vector<128x128xf32>, vector<16x128xf32> -> vector<16x128xf32>
    %c0_9 = arith.constant 0 : index
    %c0_10 = arith.constant 0 : index
    %10 = vector.load %arg5[%c0_9, %c0_10] : memref<1x128xf32, #tpu.memory_space<vmem>>, vector<1x128xf32>
    %11 = vector.broadcast %10 : vector<1x128xf32> to vector<16x128xf32>
    %12 = arith.addf %9, %11 : vector<16x128xf32>
    %cst_11 = arith.constant 0.000000e+00 : f32
    %13 = vector.broadcast %cst_11 : f32 to vector<16x128xf32>
    %14 = arith.maximumf %12, %13 : vector<16x128xf32>
    %c0_12 = arith.constant 0 : index
    %c0_13 = arith.constant 0 : index
    %15 = vector.load %arg6[%c0_12, %c0_13] : memref<128x16xf32, #tpu.memory_space<vmem>>, vector<128x16xf32>
    %cst_14 = arith.constant dense<0.000000e+00> : vector<16x16xf32>
    %16 = tpu.matmul %14, %15, %cst_14 {dimension_numbers = #tpu.dot_dimension_numbers<[1], [0], [0], [1], [0, 0, 1, 1], [], []>, precision = #tpu.contract_precision<fp32>} : vector<16x128xf32>, vector<128x16xf32>, vector<16x16xf32> -> vector<16x16xf32>
    %c0_15 = arith.constant 0 : index
    %c0_16 = arith.constant 0 : index
    %17 = vector.load %arg7[%c0_15, %c0_16] : memref<1x16xf32, #tpu.memory_space<vmem>>, vector<1x16xf32>
    %18 = vector.broadcast %17 : vector<1x16xf32> to vector<16x16xf32>
    %19 = arith.addf %16, %18 : vector<16x16xf32>
    %c0_17 = arith.constant 0 : index
    %c0_18 = arith.constant 0 : index
    %20 = vector.load %arg8[%c0_17, %c0_18] : memref<16x16xf32, #tpu.memory_space<vmem>>, vector<16x16xf32>
    tpu.vector_store %arg8[%c0_17, %c0_18], %19 {strides = array<i32>} : memref<16x16xf32, #tpu.memory_space<vmem>>, vector<16x16xf32>,
    return
  }
  func.func @transform_0(%arg0: i32) -> (i32, i32) {
    %c0_i32 = arith.constant 0 : i32
    %c0_i32_0 = arith.constant 0 : i32
    return %arg0, %c0_i32 : i32, i32
  }
  func.func @transform_1(%arg0: i32) -> (i32, i32) {
    %c0_i32 = arith.constant 0 : i32
    %c0_i32_0 = arith.constant 0 : i32
    %c0_i32_1 = arith.constant 0 : i32
    return %c0_i32, %c0_i32_0 : i32, i32
  }
  func.func @transform_2(%arg0: i32) -> (i32, i32) {
    %c0_i32 = arith.constant 0 : i32
    %c0_i32_0 = arith.constant 0 : i32
    %c0_i32_1 = arith.constant 0 : i32
    return %c0_i32, %c0_i32_0 : i32, i32
  }
  func.func @transform_3(%arg0: i32) -> (i32, i32) {
    %c0_i32 = arith.constant 0 : i32
    %c0_i32_0 = arith.constant 0 : i32
    %c0_i32_1 = arith.constant 0 : i32
    return %c0_i32, %c0_i32_0 : i32, i32
  }
  func.func @transform_4(%arg0: i32) -> (i32, i32) {
    %c0_i32 = arith.constant 0 : i32
    %c0_i32_0 = arith.constant 0 : i32
    %c0_i32_1 = arith.constant 0 : i32
    return %c0_i32, %c0_i32_0 : i32, i32
  }
  func.func @transform_5(%arg0: i32) -> (i32, i32) {
    %c0_i32 = arith.constant 0 : i32
    %c0_i32_0 = arith.constant 0 : i32
    %c0_i32_1 = arith.constant 0 : i32
    return %c0_i32, %c0_i32_0 : i32, i32
  }
  func.func @transform_6(%arg0: i32) -> (i32, i32) {
    %c0_i32 = arith.constant 0 : i32
    %c0_i32_0 = arith.constant 0 : i32
    %c0_i32_1 = arith.constant 0 : i32
    return %c0_i32, %c0_i32_0 : i32, i32
  }
  func.func @transform_7(%arg0: i32) -> (i32, i32) {
    %c0_i32 = arith.constant 0 : i32
    %c0_i32_0 = arith.constant 0 : i32
    return %arg0, %c0_i32 : i32, i32
  }
}

</mosaic_0001>

<llo_original>
// kernel: inlier_decoder_forward.1
$region0: #{inlier_decoder_forward.1}
  #allocation0 [shape = 'u32[]', space=smem, size = 0x4, offset = 0x4, fixed_abs, tag = 'smem constant byte address 0x4 - core index']
  #allocation1 [shape = 'u32[144,128]{1,0:T(1,128)}', space=vmem, size = 0x12000, scoped, tag = 'internal scratch']
  %s0 = inlined_call_operand.vmem [shape: f32[16,32], index: 0, kind: input, shape index: {}]
  %s1 = inlined_call_operand.vmem [shape: f32[32,128], index: 1, kind: input, shape index: {}]
  %s2 = inlined_call_operand.vmem [shape: f32[1,128], index: 2, kind: input, shape index: {}]
  %s3 = inlined_call_operand.vmem [shape: f32[128,128], index: 3, kind: input, shape index: {}]
  %s4 = inlined_call_operand.vmem [shape: f32[1,128], index: 4, kind: input, shape index: {}]
  %s5 = inlined_call_operand.vmem [shape: f32[128,16], index: 5, kind: input, shape index: {}]
  %s6 = inlined_call_operand.vmem [shape: f32[1,16], index: 6, kind: input, shape index: {}]
  %s7 = inlined_call_operand.hbm [shape: f32[16,16], index: 7, kind: output, shape index: {}]
  %s8 = sld [smem:[#allocation0]]
  $region38: #{inlier_decoder_forward.1} parent=0
    _
  %s10 = ssub.s32 1, %s8
  %s11 = scalar_select 0, %s10, %s8
  $region1: #{inlier_decoder_forward.1} parent=0
    #allocation2 [shape = 'u8[8192]{0}', space=vmem, size = 0x2000, scoped, tag = 'output window, operand 0, single buffered']
    #allocation3 [shape = 's32[1]{0}', space=sflag, size = 0x4, scoped, tag = 'scoped memory for inlier_decoder_forward.1']
    %12 = vsyncpa [#allocation3], 0
    // Predicated region
    $region2: #{inlier_decoder_forward.1} parent=1 // pred_check
      _
    $region3: #{inlier_decoder_forward.1} parent=1 // pred_check_branch
      %14 = sbr.rel (0) target = $region5
    $region4: #{inlier_decoder_forward.1} parent=1 // pred_region
      _
    $region5: #{inlier_decoder_forward.1} parent=1 // pred_fallthru
      _
    // Predicated region
    $region6: #{inlier_decoder_forward.1} parent=1 // pred_check
      _
    $region7: #{inlier_decoder_forward.1} parent=1 // pred_check_branch
      %16 = sbr.rel (0) target = $region9
    $region8: #{inlier_decoder_forward.1} parent=1 // pred_region
      _
    $region9: #{inlier_decoder_forward.1} parent=1 // pred_fallthru
      _
    // Predicated region
    $region10: #{inlier_decoder_forward.1} parent=1 // pred_check
      _
    $region11: #{inlier_decoder_forward.1} parent=1 // pred_check_branch
      %18 = sbr.rel (0) target = $region13
    $region12: #{inlier_decoder_forward.1} parent=1 // pred_region
      _
    $region13: #{inlier_decoder_forward.1} parent=1 // pred_fallthru
      _
    // Predicated region
    $region14: #{inlier_decoder_forward.1} parent=1 // pred_check
      _
    $region15: #{inlier_decoder_forward.1} parent=1 // pred_check_branch
      %20 = sbr.rel (0) target = $region17
    $region16: #{inlier_decoder_forward.1} parent=1 // pred_region
      _
    $region17: #{inlier_decoder_forward.1} parent=1 // pred_fallthru
      _
    // Predicated region
    $region18: #{inlier_decoder_forward.1} parent=1 // pred_check
      _
    $region19: #{inlier_decoder_forward.1} parent=1 // pred_check_branch
      %22 = sbr.rel (0) target = $region21
    $region20: #{inlier_decoder_forward.1} parent=1 // pred_region
      _
    $region21: #{inlier_decoder_forward.1} parent=1 // pred_fallthru
      _
    // Predicated region
    $region22: #{inlier_decoder_forward.1} parent=1 // pred_check
      _
    $region23: #{inlier_decoder_forward.1} parent=1 // pred_check_branch
      %24 = sbr.rel (0) target = $region25
    $region24: #{inlier_decoder_forward.1} parent=1 // pred_region
      _
    $region25: #{inlier_decoder_forward.1} parent=1 // pred_fallthru
      _
    // Predicated region
    $region26: #{inlier_decoder_forward.1} parent=1 // pred_check
      _
    $region27: #{inlier_decoder_forward.1} parent=1 // pred_check_branch
      %26 = sbr.rel (0) target = $region29
    $region28: #{inlier_decoder_forward.1} parent=1 // pred_region
      _
    $region29: #{inlier_decoder_forward.1} parent=1 // pred_fallthru
      _
    %v27 = vld [vmem:[%s0] sm:$0xff]
    %v28 = vld [vmem:[%s0 + $0x8] sm:$0xff]
    %v29 = vld [vmem:[%s1] sm:$0xff]
    %v30 = vld [vmem:[%s1 + $0x8] sm:$0xff]
    %v31 = vld [vmem:[%s1 + $0x10] sm:$0xff]
    %v32 = vld [vmem:[%s1 + $0x18] sm:$0xff]
    %v33 = vld [vmem:[%s2] sm:$0x1]
    %v35 = vlaneseq
    %v36 = vshrl.u32 %v35, 7
    %v37 = vsub.s32 0, %v36
    %v38 = vrot.slane %v33, %v37
    %vm40 = vcmask 261120
    %v42 = vsel %vm40, %v27, 0
    %v45 = vsel %vm40, %v28, 0
    %47 = vmatprep.subr.mxu0 0.0
    %48 = vmatpush1.msra.mxu0 0.0
    %49 = vmatprep.subr.mxu0 0.0
    %50 = vmatpush1.msra.mxu0 0.0
    %51 = vmatprep.subr.mxu0 0.0
    %52 = vmatpush1.msra.mxu0 0.0
    %53 = vmatprep.subr.mxu0 0.0
    %54 = vmatpush1.msra.mxu0 0.0
    %55 = vmatprep.subr.mxu0 0.0
    %56 = vmatpush1.msra.mxu0 0.0
    %57 = vmatprep.subr.mxu0 0.0
    %58 = vmatpush1.msra.mxu0 0.0
    %59 = vmatprep.subr.mxu0 0.0
    %60 = vmatpush1.msra.mxu0 0.0
    %61 = vmatprep.subr.mxu0 0.0
    %62 = vmatpush1.msra.mxu0 0.0
    %63 = vmatprep.subr.mxu0 0.0
    %64 = vmatpush1.msra.mxu0 0.0
    %65 = vmatprep.subr.mxu0 0.0
    %66 = vmatpush1.msra.mxu0 0.0
    %67 = vmatprep.subr.mxu0 0.0
    %68 = vmatpush1.msra.mxu0 0.0
    %69 = vmatprep.subr.mxu0 0.0
    %70 = vmatpush1.msra.mxu0 0.0
    %71 = vmatprep.subr.mxu0 0.0
    %v72 = vand.u32 %v32, 4294901760
    %73 = vmatpush1.msra.mxu0 %v72
    %74 = vmatprep.subr.mxu0 0.0
    %v75 = vand.u32 %v31, 4294901760
    %76 = vmatpush1.msra.mxu0 %v75
    %77 = vmatprep.subr.mxu0 0.0
    %v78 = vand.u32 %v30, 4294901760
    %79 = vmatpush1.msra.mxu0 %v78
    %80 = vmatprep.subr.mxu0 0.0
    %v81 = vand.u32 %v29, 4294901760
    %82 = vmatpush1.msra.mxu0 %v81
    %83 = vmatprep.subr.mxu0 0.0
    %84 = vmatpush2.msra.mxu0 0.0
    %85 = vmatprep.subr.mxu0 0.0
    %86 = vmatpush2.msra.mxu0 0.0
    %87 = vmatprep.subr.mxu0 0.0
    %88 = vmatpush2.msra.mxu0 0.0
    %89 = vmatprep.subr.mxu0 0.0
    %90 = vmatpush2.msra.mxu0 0.0
    %91 = vmatprep.subr.mxu0 0.0
    %92 = vmatpush2.msra.mxu0 0.0
    %93 = vmatprep.subr.mxu0 0.0
    %94 = vmatpush2.msra.mxu0 0.0
    %95 = vmatprep.subr.mxu0 0.0
    %96 = vmatpush2.msra.mxu0 0.0
    %97 = vmatprep.subr.mxu0 0.0
    %98 = vmatpush2.msra.mxu0 0.0
    %99 = vmatprep.subr.mxu0 0.0
    %100 = vmatpush2.msra.mxu0 0.0
    %101 = vmatprep.subr.mxu0 0.0
    %102 = vmatpush2.msra.mxu0 0.0
    %103 = vmatprep.subr.mxu0 0.0
    %104 = vmatpush2.msra.mxu0 0.0
    %105 = vmatprep.subr.mxu0 0.0
    %106 = vmatpush2.msra.mxu0 0.0
    %107 = vmatprep.subr.mxu0 0.0
    %108 = vmatpush2.msra.mxu0 0.0
    %109 = vmatprep.subr.mxu0 0.0
    %110 = vmatpush2.msra.mxu0 0.0
    %111 = vmatprep.subr.mxu0 0.0
    %112 = vmatpush2.msra.mxu0 0.0
    %113 = vmatprep.subr.mxu0 0.0
    %114 = vmatpush2.msra.mxu0 0.0
    %115 = vmatprep.mubr.f32.mxu0 0.0
    %v116 = vand.u32 %v42, 4294901760
    %v117 = vsub.f32 %v42, %v116
    %v118 = vand.u32 %v117, 4294901760
    %v119 = vsub.f32 %v117, %v118
    %v120 = vand.u32 %v119, 4294901760
    %121 = vmatmul.mubr.f32.gmra.mxu0 %v120
    %v122 = vpop.f32.mrf.mxu0
    %v123 = vadd.f32 %v38, %v122
    %v124 = vpop.f32.mrf.mxu0
    %125 = vmatprep.mubr.f32.mxu0 0.0
    %v126 = vand.u32 %v45, 4294901760
    %v127 = vsub.f32 %v45, %v126
    %v128 = vand.u32 %v127, 4294901760
    %v129 = vsub.f32 %v127, %v128
    %v130 = vand.u32 %v129, 4294901760
    %131 = vmatmul.mubr.f32.gmra.mxu0 %v130
    %v132 = vpop.f32.mrf.mxu0
    %v133 = vadd.f32 %v38, %v132
    %v134 = vpop.f32.mrf.mxu0
    %135 = vdwg.mxu0
    %136 = vmatprep.subr.mxu0 0.0
    %137 = vmatpush1.msra.mxu0 0.0
    %138 = vmatprep.subr.mxu0 0.0
    %139 = vmatpush1.msra.mxu0 0.0
    %140 = vmatprep.subr.mxu0 0.0
    %141 = vmatpush1.msra.mxu0 0.0
    %142 = vmatprep.subr.mxu0 0.0
    %143 = vmatpush1.msra.mxu0 0.0
    %144 = vmatprep.subr.mxu0 0.0
    %145 = vmatpush1.msra.mxu0 0.0
    %146 = vmatprep.subr.mxu0 0.0
    %147 = vmatpush1.msra.mxu0 0.0
    %148 = vmatprep.subr.mxu0 0.0
    %149 = vmatpush1.msra.mxu0 0.0
    %150 = vmatprep.subr.mxu0 0.0
    %151 = vmatpush1.msra.mxu0 0.0
    %152 = vmatprep.subr.mxu0 0.0
    %153 = vmatpush1.msra.mxu0 0.0
    %154 = vmatprep.subr.mxu0 0.0
    %155 = vmatpush1.msra.mxu0 0.0
    %156 = vmatprep.subr.mxu0 0.0
    %157 = vmatpush1.msra.mxu0 0.0
    %158 = vmatprep.subr.mxu0 0.0
    %159 = vmatpush1.msra.mxu0 0.0
    %160 = vmatprep.subr.mxu0 0.0
    %v161 = vand.u32 %v32, 4294901760
    %v162 = vsub.f32 %v32, %v161
    %v163 = vand.u32 %v162, 4294901760
    %v164 = vsub.f32 %v162, %v163
    %v165 = vand.u32 %v164, 4294901760
    %166 = vmatpush1.msra.mxu0 %v165
    %167 = vmatprep.subr.mxu0 0.0
    %v168 = vand.u32 %v31, 4294901760
    %v169 = vsub.f32 %v31, %v168
    %v170 = vand.u32 %v169, 4294901760
    %v171 = vsub.f32 %v169, %v170
    %v172 = vand.u32 %v171, 4294901760
    %173 = vmatpush1.msra.mxu0 %v172
    %174 = vmatprep.subr.mxu0 0.0
    %v175 = vand.u32 %v30, 4294901760
    %v176 = vsub.f32 %v30, %v175
    %v177 = vand.u32 %v176, 4294901760
    %v178 = vsub.f32 %v176, %v177
    %v179 = vand.u32 %v178, 4294901760
    %180 = vmatpush1.msra.mxu0 %v179
    %181 = vmatprep.subr.mxu0 0.0
    %v182 = vand.u32 %v29, 4294901760
    %v183 = vsub.f32 %v29, %v182
    %v184 = vand.u32 %v183, 4294901760
    %v185 = vsub.f32 %v183, %v184
    %v186 = vand.u32 %v185, 4294901760
    %187 = vmatpush1.msra.mxu0 %v186
    %188 = vmatprep.subr.mxu0 0.0
    %189 = vmatpush2.msra.mxu0 0.0
    %190 = vmatprep.subr.mxu0 0.0
    %191 = vmatpush2.msra.mxu0 0.0
    %192 = vmatprep.subr.mxu0 0.0
    %193 = vmatpush2.msra.mxu0 0.0
    %194 = vmatprep.subr.mxu0 0.0
    %195 = vmatpush2.msra.mxu0 0.0
    %196 = vmatprep.subr.mxu0 0.0
    %197 = vmatpush2.msra.mxu0 0.0
    %198 = vmatprep.subr.mxu0 0.0
    %199 = vmatpush2.msra.mxu0 0.0
    %200 = vmatprep.subr.mxu0 0.0
    %201 = vmatpush2.msra.mxu0 0.0
    %202 = vmatprep.subr.mxu0 0.0
    %203 = vmatpush2.msra.mxu0 0.0
    %204 = vmatprep.subr.mxu0 0.0
    %205 = vmatpush2.msra.mxu0 0.0
    %206 = vmatprep.subr.mxu0 0.0
    %207 = vmatpush2.msra.mxu0 0.0
    %208 = vmatprep.subr.mxu0 0.0
    %209 = vmatpush2.msra.mxu0 0.0
    %210 = vmatprep.subr.mxu0 0.0
    %211 = vmatpush2.msra.mxu0 0.0
    %212 = vmatprep.subr.mxu0 0.0
    %213 = vmatpush2.msra.mxu0 0.0
    %214 = vmatprep.subr.mxu0 0.0
    %215 = vmatpush2.msra.mxu0 0.0
    %216 = vmatprep.subr.mxu0 0.0
    %217 = vmatpush2.msra.mxu0 0.0
    %218 = vmatprep.subr.mxu0 0.0
    %219 = vmatpush2.msra.mxu0 0.0
    %220 = vmatprep.mubr.f32.mxu0 0.0
    %v221 = vand.u32 %v42, 4294901760
    %222 = vmatmul.mubr.f32.gmra.mxu0 %v221
    %v223 = vpop.f32.mrf.mxu0
    %v224 = vadd.f32 %v123, %v223
    %v225 = vpop.f32.mrf.mxu0
    %226 = vmatprep.mubr.f32.mxu0 0.0
    %v227 = vand.u32 %v45, 4294901760
    %228 = vmatmul.mubr.f32.gmra.mxu0 %v227
    %v229 = vpop.f32.mrf.mxu0
    %v230 = vadd.f32 %v133, %v229
    %v231 = vpop.f32.mrf.mxu0
    %232 = vdwg.mxu0
    %233 = vmatprep.subr.mxu0 0.0
    %234 = vmatpush1.msra.mxu0 0.0
    %235 = vmatprep.subr.mxu0 0.0
    %236 = vmatpush1.msra.mxu0 0.0
    %237 = vmatprep.subr.mxu0 0.0
    %238 = vmatpush1.msra.mxu0 0.0
    %239 = vmatprep.subr.mxu0 0.0
    %240 = vmatpush1.msra.mxu0 0.0
    %241 = vmatprep.subr.mxu0 0.0
    %242 = vmatpush1.msra.mxu0 0.0
    %243 = vmatprep.subr.mxu0 0.0
    %244 = vmatpush1.msra.mxu0 0.0
    %245 = vmatprep.subr.mxu0 0.0
    %246 = vmatpush1.msra.mxu0 0.0
    %247 = vmatprep.subr.mxu0 0.0
    %248 = vmatpush1.msra.mxu0 0.0
    %249 = vmatprep.subr.mxu0 0.0
    %250 = vmatpush1.msra.mxu0 0.0
    %251 = vmatprep.subr.mxu0 0.0
    %252 = vmatpush1.msra.mxu0 0.0
    %253 = vmatprep.subr.mxu0 0.0
    %254 = vmatpush1.msra.mxu0 0.0
    %255 = vmatprep.subr.mxu0 0.0
    %256 = vmatpush1.msra.mxu0 0.0
    %257 = vmatprep.subr.mxu0 0.0
    %v258 = vand.u32 %v32, 4294901760
    %v259 = vsub.f32 %v32, %v258
    %260 = vmatpush1.msra.mxu0 %v259
    %261 = vmatprep.subr.mxu0 0.0
    %v262 = vand.u32 %v31, 4294901760
    %v263 = vsub.f32 %v31, %v262
    %264 = vmatpush1.msra.mxu0 %v263
    %265 = vmatprep.subr.mxu0 0.0
    %v266 = vand.u32 %v30, 4294901760
    %v267 = vsub.f32 %v30, %v266
    %268 = vmatpush1.msra.mxu0 %v267
    %269 = vmatprep.subr.mxu0 0.0
    %v270 = vand.u32 %v29, 4294901760
    %v271 = vsub.f32 %v29, %v270
    %272 = vmatpush1.msra.mxu0 %v271
    %273 = vmatprep.subr.mxu0 0.0
    %274 = vmatpush2.msra.mxu0 0.0
    %275 = vmatprep.subr.mxu0 0.0
    %276 = vmatpush2.msra.mxu0 0.0
    %277 = vmatprep.subr.mxu0 0.0
    %278 = vmatpush2.msra.mxu0 0.0
    %279 = vmatprep.subr.mxu0 0.0
    %280 = vmatpush2.msra.mxu0 0.0
    %281 = vmatprep.subr.mxu0 0.0
    %282 = vmatpush2.msra.mxu0 0.0
    %283 = vmatprep.subr.mxu0 0.0
    %284 = vmatpush2.msra.mxu0 0.0
    %285 = vmatprep.subr.mxu0 0.0
    %286 = vmatpush2.msra.mxu0 0.0
    %287 = vmatprep.subr.mxu0 0.0
    %288 = vmatpush2.msra.mxu0 0.0
    %289 = vmatprep.subr.mxu0 0.0
    %290 = vmatpush2.msra.mxu0 0.0
    %291 = vmatprep.subr.mxu0 0.0
    %292 = vmatpush2.msra.mxu0 0.0
    %293 = vmatprep.subr.mxu0 0.0
    %294 = vmatpush2.msra.mxu0 0.0
    %295 = vmatprep.subr.mxu0 0.0
    %296 = vmatpush2.msra.mxu0 0.0
    %297 = vmatprep.subr.mxu0 0.0
    %298 = vmatpush2.msra.mxu0 0.0
    %299 = vmatprep.subr.mxu0 0.0
    %300 = vmatpush2.msra.mxu0 0.0
    %301 = vmatprep.subr.mxu0 0.0
    %302 = vmatpush2.msra.mxu0 0.0
    %303 = vmatprep.subr.mxu0 0.0
    %304 = vmatpush2.msra.mxu0 0.0
    %305 = vmatprep.mubr.f32.mxu0 0.0
    %v306 = vand.u32 %v42, 4294901760
    %v307 = vsub.f32 %v42, %v306
    %308 = vmatmul.mubr.f32.gmra.mxu0 %v307
    %v309 = vpop.f32.mrf.mxu0
    %v310 = vadd.f32 %v224, %v309
    %v311 = vpop.f32.mrf.mxu0
    %312 = vmatprep.mubr.f32.mxu0 0.0
    %v313 = vand.u32 %v45, 4294901760
    %v314 = vsub.f32 %v45, %v313
    %315 = vmatmul.mubr.f32.gmra.mxu0 %v314
    %v316 = vpop.f32.mrf.mxu0
    %v317 = vadd.f32 %v230, %v316
    %v318 = vpop.f32.mrf.mxu0
    %319 = vdwg.mxu0
    %320 = vmatprep.subr.mxu0 0.0
    %321 = vmatpush1.msra.mxu0 0.0
    %322 = vmatprep.subr.mxu0 0.0
    %323 = vmatpush1.msra.mxu0 0.0
    %324 = vmatprep.subr.mxu0 0.0
    %325 = vmatpush1.msra.mxu0 0.0
    %326 = vmatprep.subr.mxu0 0.0
    %327 = vmatpush1.msra.mxu0 0.0
    %328 = vmatprep.subr.mxu0 0.0
    %329 = vmatpush1.msra.mxu0 0.0
    %330 = vmatprep.subr.mxu0 0.0
    %331 = vmatpush1.msra.mxu0 0.0
    %332 = vmatprep.subr.mxu0 0.0
    %333 = vmatpush1.msra.mxu0 0.0
    %334 = vmatprep.subr.mxu0 0.0
    %335 = vmatpush1.msra.mxu0 0.0
    %336 = vmatprep.subr.mxu0 0.0
    %337 = vmatpush1.msra.mxu0 0.0
    %338 = vmatprep.subr.mxu0 0.0
    %339 = vmatpush1.msra.mxu0 0.0
    %340 = vmatprep.subr.mxu0 0.0
    %341 = vmatpush1.msra.mxu0 0.0
    %342 = vmatprep.subr.mxu0 0.0
    %343 = vmatpush1.msra.mxu0 0.0
    %344 = vmatprep.subr.mxu0 0.0
    %v345 = vand.u32 %v32, 4294901760
    %346 = vmatpush1.msra.mxu0 %v345
    %347 = vmatprep.subr.mxu0 0.0
    %v348 = vand.u32 %v31, 4294901760
    %349 = vmatpush1.msra.mxu0 %v348
    %350 = vmatprep.subr.mxu0 0.0
    %v351 = vand.u32 %v30, 4294901760
    %352 = vmatpush1.msra.mxu0 %v351
    %353 = vmatprep.subr.mxu0 0.0
    %v354 = vand.u32 %v29, 4294901760
    %355 = vmatpush1.msra.mxu0 %v354
    %356 = vmatprep.subr.mxu0 0.0
    %357 = vmatpush2.msra.mxu0 0.0
    %358 = vmatprep.subr.mxu0 0.0
    %359 = vmatpush2.msra.mxu0 0.0
    %360 = vmatprep.subr.mxu0 0.0
    %361 = vmatpush2.msra.mxu0 0.0
    %362 = vmatprep.subr.mxu0 0.0
    %363 = vmatpush2.msra.mxu0 0.0
    %364 = vmatprep.subr.mxu0 0.0
    %365 = vmatpush2.msra.mxu0 0.0
    %366 = vmatprep.subr.mxu0 0.0
    %367 = vmatpush2.msra.mxu0 0.0
    %368 = vmatprep.subr.mxu0 0.0
    %369 = vmatpush2.msra.mxu0 0.0
    %370 = vmatprep.subr.mxu0 0.0
    %371 = vmatpush2.msra.mxu0 0.0
    %372 = vmatprep.subr.mxu0 0.0
    %373 = vmatpush2.msra.mxu0 0.0
    %374 = vmatprep.subr.mxu0 0.0
    %375 = vmatpush2.msra.mxu0 0.0
    %376 = vmatprep.subr.mxu0 0.0
    %377 = vmatpush2.msra.mxu0 0.0
    %378 = vmatprep.subr.mxu0 0.0
    %379 = vmatpush2.msra.mxu0 0.0
    %380 = vmatprep.subr.mxu0 0.0
    %381 = vmatpush2.msra.mxu0 0.0
    %382 = vmatprep.subr.mxu0 0.0
    %383 = vmatpush2.msra.mxu0 0.0
    %384 = vmatprep.subr.mxu0 0.0
    %385 = vmatpush2.msra.mxu0 0.0
    %386 = vmatprep.subr.mxu0 0.0
    %387 = vmatpush2.msra.mxu0 0.0
    %388 = vmatprep.mubr.f32.mxu0 0.0
    %v389 = vand.u32 %v42, 4294901760
    %v390 = vsub.f32 %v42, %v389
    %v391 = vand.u32 %v390, 4294901760
    %392 = vmatmul.mubr.f32.gmra.mxu0 %v391
    %v393 = vpop.f32.mrf.mxu0
    %v394 = vadd.f32 %v310, %v393
    %v395 = vpop.f32.mrf.mxu0
    %396 = vmatprep.mubr.f32.mxu0 0.0
    %v397 = vand.u32 %v45, 4294901760
    %v398 = vsub.f32 %v45, %v397
    %v399 = vand.u32 %v398, 4294901760
    %400 = vmatmul.mubr.f32.gmra.mxu0 %v399
    %v401 = vpop.f32.mrf.mxu0
    %v402 = vadd.f32 %v317, %v401
    %v403 = vpop.f32.mrf.mxu0
    %404 = vdwg.mxu0
    %405 = vmatprep.subr.mxu0 0.0
    %406 = vmatpush1.msra.mxu0 0.0
    %407 = vmatprep.subr.mxu0 0.0
    %408 = vmatpush1.msra.mxu0 0.0
    %409 = vmatprep.subr.mxu0 0.0
    %410 = vmatpush1.msra.mxu0 0.0
    %411 = vmatprep.subr.mxu0 0.0
    %412 = vmatpush1.msra.mxu0 0.0
    %413 = vmatprep.subr.mxu0 0.0
    %414 = vmatpush1.msra.mxu0 0.0
    %415 = vmatprep.subr.mxu0 0.0
    %416 = vmatpush1.msra.mxu0 0.0
    %417 = vmatprep.subr.mxu0 0.0
    %418 = vmatpush1.msra.mxu0 0.0
    %419 = vmatprep.subr.mxu0 0.0
    %420 = vmatpush1.msra.mxu0 0.0
    %421 = vmatprep.subr.mxu0 0.0
    %422 = vmatpush1.msra.mxu0 0.0
    %423 = vmatprep.subr.mxu0 0.0
    %424 = vmatpush1.msra.mxu0 0.0
    %425 = vmatprep.subr.mxu0 0.0
    %426 = vmatpush1.msra.mxu0 0.0
    %427 = vmatprep.subr.mxu0 0.0
    %428 = vmatpush1.msra.mxu0 0.0
    %429 = vmatprep.subr.mxu0 0.0
    %v430 = vand.u32 %v32, 4294901760
    %v431 = vsub.f32 %v32, %v430
    %v432 = vand.u32 %v431, 4294901760
    %433 = vmatpush1.msra.mxu0 %v432
    %434 = vmatprep.subr.mxu0 0.0
    %v435 = vand.u32 %v31, 4294901760
    %v436 = vsub.f32 %v31, %v435
    %v437 = vand.u32 %v436, 4294901760
    %438 = vmatpush1.msra.mxu0 %v437
    %439 = vmatprep.subr.mxu0 0.0
    %v440 = vand.u32 %v30, 4294901760
    %v441 = vsub.f32 %v30, %v440
    %v442 = vand.u32 %v441, 4294901760
    %443 = vmatpush1.msra.mxu0 %v442
    %444 = vmatprep.subr.mxu0 0.0
    %v445 = vand.u32 %v29, 4294901760
    %v446 = vsub.f32 %v29, %v445
    %v447 = vand.u32 %v446, 4294901760
    %448 = vmatpush1.msra.mxu0 %v447
    %449 = vmatprep.subr.mxu0 0.0
    %450 = vmatpush2.msra.mxu0 0.0
    %451 = vmatprep.subr.mxu0 0.0
    %452 = vmatpush2.msra.mxu0 0.0
    %453 = vmatprep.subr.mxu0 0.0
    %454 = vmatpush2.msra.mxu0 0.0
    %455 = vmatprep.subr.mxu0 0.0
    %456 = vmatpush2.msra.mxu0 0.0
    %457 = vmatprep.subr.mxu0 0.0
    %458 = vmatpush2.msra.mxu0 0.0
    %459 = vmatprep.subr.mxu0 0.0
    %460 = vmatpush2.msra.mxu0 0.0
    %461 = vmatprep.subr.mxu0 0.0
    %462 = vmatpush2.msra.mxu0 0.0
    %463 = vmatprep.subr.mxu0 0.0
    %464 = vmatpush2.msra.mxu0 0.0
    %465 = vmatprep.subr.mxu0 0.0
    %466 = vmatpush2.msra.mxu0 0.0
    %467 = vmatprep.subr.mxu0 0.0
    %468 = vmatpush2.msra.mxu0 0.0
    %469 = vmatprep.subr.mxu0 0.0
    %470 = vmatpush2.msra.mxu0 0.0
    %471 = vmatprep.subr.mxu0 0.0
    %472 = vmatpush2.msra.mxu0 0.0
    %473 = vmatprep.subr.mxu0 0.0
    %474 = vmatpush2.msra.mxu0 0.0
    %475 = vmatprep.subr.mxu0 0.0
    %476 = vmatpush2.msra.mxu0 0.0
    %477 = vmatprep.subr.mxu0 0.0
    %478 = vmatpush2.msra.mxu0 0.0
    %479 = vmatprep.subr.mxu0 0.0
    %480 = vmatpush2.msra.mxu0 0.0
    %481 = vmatprep.mubr.f32.mxu0 0.0
    %v482 = vand.u32 %v42, 4294901760
    %483 = vmatmul.mubr.f32.gmra.mxu0 %v482
    %v484 = vpop.f32.mrf.mxu0
    %v485 = vadd.f32 %v394, %v484
    %v486 = vpop.f32.mrf.mxu0
    %487 = vmatprep.mubr.f32.mxu0 0.0
    %v488 = vand.u32 %v45, 4294901760
    %489 = vmatmul.mubr.f32.gmra.mxu0 %v488
    %v490 = vpop.f32.mrf.mxu0
    %v491 = vadd.f32 %v402, %v490
    %v492 = vpop.f32.mrf.mxu0
    %493 = vdwg.mxu0
    %494 = vmatprep.subr.mxu0 0.0
    %495 = vmatpush1.msra.mxu0 0.0
    %496 = vmatprep.subr.mxu0 0.0
    %497 = vmatpush1.msra.mxu0 0.0
    %498 = vmatprep.subr.mxu0 0.0
    %499 = vmatpush1.msra.mxu0 0.0
    %500 = vmatprep.subr.mxu0 0.0
    %501 = vmatpush1.msra.mxu0 0.0
    %502 = vmatprep.subr.mxu0 0.0
    %503 = vmatpush1.msra.mxu0 0.0
    %504 = vmatprep.subr.mxu0 0.0
    %505 = vmatpush1.msra.mxu0 0.0
    %506 = vmatprep.subr.mxu0 0.0
    %507 = vmatpush1.msra.mxu0 0.0
    %508 = vmatprep.subr.mxu0 0.0
    %509 = vmatpush1.msra.mxu0 0.0
    %510 = vmatprep.subr.mxu0 0.0
    %511 = vmatpush1.msra.mxu0 0.0
    %512 = vmatprep.subr.mxu0 0.0
    %513 = vmatpush1.msra.mxu0 0.0
    %514 = vmatprep.subr.mxu0 0.0
    %515 = vmatpush1.msra.mxu0 0.0
    %516 = vmatprep.subr.mxu0 0.0
    %517 = vmatpush1.msra.mxu0 0.0
    %518 = vmatprep.subr.mxu0 0.0
    %v519 = vand.u32 %v32, 4294901760
    %520 = vmatpush1.msra.mxu0 %v519
    %521 = vmatprep.subr.mxu0 0.0
    %v522 = vand.u32 %v31, 4294901760
    %523 = vmatpush1.msra.mxu0 %v522
    %524 = vmatprep.subr.mxu0 0.0
    %v525 = vand.u32 %v30, 4294901760
    %526 = vmatpush1.msra.mxu0 %v525
    %527 = vmatprep.subr.mxu0 0.0
    %v528 = vand.u32 %v29, 4294901760
    %529 = vmatpush1.msra.mxu0 %v528
    %530 = vmatprep.subr.mxu0 0.0
    %531 = vmatpush2.msra.mxu0 0.0
    %532 = vmatprep.subr.mxu0 0.0
    %533 = vmatpush2.msra.mxu0 0.0
    %534 = vmatprep.subr.mxu0 0.0
    %535 = vmatpush2.msra.mxu0 0.0
    %536 = vmatprep.subr.mxu0 0.0
    %537 = vmatpush2.msra.mxu0 0.0
    %538 = vmatprep.subr.mxu0 0.0
    %539 = vmatpush2.msra.mxu0 0.0
    %540 = vmatprep.subr.mxu0 0.0
    %541 = vmatpush2.msra.mxu0 0.0
    %542 = vmatprep.subr.mxu0 0.0
    %543 = vmatpush2.msra.mxu0 0.0
    %544 = vmatprep.subr.mxu0 0.0
    %545 = vmatpush2.msra.mxu0 0.0
    %546 = vmatprep.subr.mxu0 0.0
    %547 = vmatpush2.msra.mxu0 0.0
    %548 = vmatprep.subr.mxu0 0.0
    %549 = vmatpush2.msra.mxu0 0.0
    %550 = vmatprep.subr.mxu0 0.0
    %551 = vmatpush2.msra.mxu0 0.0
    %552 = vmatprep.subr.mxu0 0.0
    %553 = vmatpush2.msra.mxu0 0.0
    %554 = vmatprep.subr.mxu0 0.0
    %555 = vmatpush2.msra.mxu0 0.0
    %556 = vmatprep.subr.mxu0 0.0
    %557 = vmatpush2.msra.mxu0 0.0
    %558 = vmatprep.subr.mxu0 0.0
    %559 = vmatpush2.msra.mxu0 0.0
    %560 = vmatprep.subr.mxu0 0.0
    %561 = vmatpush2.msra.mxu0 0.0
    %562 = vmatprep.mubr.f32.mxu0 0.0
    %v563 = vand.u32 %v42, 4294901760
    %564 = vmatmul.mubr.f32.gmra.mxu0 %v563
    %v565 = vpop.f32.mrf.mxu0
    %v566 = vadd.f32 %v485, %v565
    %v567 = vpop.f32.mrf.mxu0
    %568 = vmatprep.mubr.f32.mxu0 0.0
    %v569 = vand.u32 %v45, 4294901760
    %570 = vmatmul.mubr.f32.gmra.mxu0 %v569
    %v571 = vpop.f32.mrf.mxu0
    %v572 = vadd.f32 %v491, %v571
    %v573 = vpop.f32.mrf.mxu0
    %574 = vdwg.mxu0
    %v575 = vmax.f32 %v566, 0.0
    %v576 = vmax.f32 %v572, 0.0
    %v577 = vld [vmem:[%s3] sm:$0xff]
    %v578 = vld [vmem:[%s3 + $0x8] sm:$0xff]
    %v579 = vld [vmem:[%s3 + $0x10] sm:$0xff]
    %v580 = vld [vmem:[%s3 + $0x18] sm:$0xff]
    %v581 = vld [vmem:[%s3 + $0x20] sm:$0xff]
    %v582 = vld [vmem:[%s3 + $0x28] sm:$0xff]
    %v583 = vld [vmem:[%s3 + $0x30] sm:$0xff]
    %v584 = vld [vmem:[%s3 + $0x38] sm:$0xff]
    %v585 = vld [vmem:[%s3 + $0x40] sm:$0xff]
    %v586 = vld [vmem:[%s3 + $0x48] sm:$0xff]
    %v587 = vld [vmem:[%s3 + $0x50] sm:$0xff]
    %v588 = vld [vmem:[%s3 + $0x58] sm:$0xff]
    %v589 = vld [vmem:[%s3 + $0x60] sm:$0xff]
    %v590 = vld [vmem:[%s3 + $0x68] sm:$0xff]
    %v591 = vld [vmem:[%s3 + $0x70] sm:$0xff]
    %v592 = vld [vmem:[%s3 + $0x78] sm:$0xff]
    %v593 = vld [vmem:[%s4] sm:$0x1]
    %v595 = vlaneseq
    %v596 = vshrl.u32 %v595, 7
    %v597 = vsub.s32 0, %v596
    %v598 = vrot.slane %v593, %v597
    %600 = vmatprep.subr.mxu0 0.0
    %v601 = vand.u32 %v592, 4294901760
    %602 = vmatpush1.msra.mxu0 %v601
    %603 = vmatprep.subr.mxu0 0.0
    %v604 = vand.u32 %v591, 4294901760
    %605 = vmatpush1.msra.mxu0 %v604
    %606 = vmatprep.subr.mxu0 0.0
    %v607 = vand.u32 %v590, 4294901760
    %608 = vmatpush1.msra.mxu0 %v607
    %609 = vmatprep.subr.mxu0 0.0
    %v610 = vand.u32 %v589, 4294901760
    %611 = vmatpush1.msra.mxu0 %v610
    %612 = vmatprep.subr.mxu0 0.0
    %v613 = vand.u32 %v588, 4294901760
    %614 = vmatpush1.msra.mxu0 %v613
    %615 = vmatprep.subr.mxu0 0.0
    %v616 = vand.u32 %v587, 4294901760
    %617 = vmatpush1.msra.mxu0 %v616
    %618 = vmatprep.subr.mxu0 0.0
    %v619 = vand.u32 %v586, 4294901760
    %620 = vmatpush1.msra.mxu0 %v619
    %621 = vmatprep.subr.mxu0 0.0
    %v622 = vand.u32 %v585, 4294901760
    %623 = vmatpush1.msra.mxu0 %v622
    %624 = vmatprep.subr.mxu0 0.0
    %v625 = vand.u32 %v584, 4294901760
    %626 = vmatpush1.msra.mxu0 %v625
    %627 = vmatprep.subr.mxu0 0.0
    %v628 = vand.u32 %v583, 4294901760
    %629 = vmatpush1.msra.mxu0 %v628
    %630 = vmatprep.subr.mxu0 0.0
    %v631 = vand.u32 %v582, 4294901760
    %632 = vmatpush1.msra.mxu0 %v631
    %633 = vmatprep.subr.mxu0 0.0
    %v634 = vand.u32 %v581, 4294901760
    %635 = vmatpush1.msra.mxu0 %v634
    %636 = vmatprep.subr.mxu0 0.0
    %v637 = vand.u32 %v580, 4294901760
    %638 = vmatpush1.msra.mxu0 %v637
    %639 = vmatprep.subr.mxu0 0.0
    %v640 = vand.u32 %v579, 4294901760
    %641 = vmatpush1.msra.mxu0 %v640
    %642 = vmatprep.subr.mxu0 0.0
    %v643 = vand.u32 %v578, 4294901760
    %644 = vmatpush1.msra.mxu0 %v643
    %645 = vmatprep.subr.mxu0 0.0
    %v646 = vand.u32 %v577, 4294901760
    %647 = vmatpush1.msra.mxu0 %v646
    %648 = vmatprep.subr.mxu0 0.0
    %649 = vmatpush2.msra.mxu0 0.0
    %650 = vmatprep.subr.mxu0 0.0
    %651 = vmatpush2.msra.mxu0 0.0
    %652 = vmatprep.subr.mxu0 0.0
    %653 = vmatpush2.msra.mxu0 0.0
    %654 = vmatprep.subr.mxu0 0.0
    %655 = vmatpush2.msra.mxu0 0.0
    %656 = vmatprep.subr.mxu0 0.0
    %657 = vmatpush2.msra.mxu0 0.0
    %658 = vmatprep.subr.mxu0 0.0
    %659 = vmatpush2.msra.mxu0 0.0
    %660 = vmatprep.subr.mxu0 0.0
    %661 = vmatpush2.msra.mxu0 0.0
    %662 = vmatprep.subr.mxu0 0.0
    %663 = vmatpush2.msra.mxu0 0.0
    %664 = vmatprep.subr.mxu0 0.0
    %665 = vmatpush2.msra.mxu0 0.0
    %666 = vmatprep.subr.mxu0 0.0
    %667 = vmatpush2.msra.mxu0 0.0
    %668 = vmatprep.subr.mxu0 0.0
    %669 = vmatpush2.msra.mxu0 0.0
    %670 = vmatprep.subr.mxu0 0.0
    %671 = vmatpush2.msra.mxu0 0.0
    %672 = vmatprep.subr.mxu0 0.0
    %673 = vmatpush2.msra.mxu0 0.0
    %674 = vmatprep.subr.mxu0 0.0
    %675 = vmatpush2.msra.mxu0 0.0
    %676 = vmatprep.subr.mxu0 0.0
    %677 = vmatpush2.msra.mxu0 0.0
    %678 = vmatprep.subr.mxu0 0.0
    %679 = vmatpush2.msra.mxu0 0.0
    %680 = vmatprep.mubr.f32.mxu0 0.0
    %v681 = vand.u32 %v575, 4294901760
    %v682 = vsub.f32 %v575, %v681
    %v683 = vand.u32 %v682, 4294901760
    %v684 = vsub.f32 %v682, %v683
    %v685 = vand.u32 %v684, 4294901760
    %686 = vmatmul.mubr.f32.gmra.mxu0 %v685
    %v687 = vpop.f32.mrf.mxu0
    %v688 = vadd.f32 %v598, %v687
    %v689 = vpop.f32.mrf.mxu0
    %690 = vmatprep.mubr.f32.mxu0 0.0
    %v691 = vand.u32 %v576, 4294901760
    %v692 = vsub.f32 %v576, %v691
    %v693 = vand.u32 %v692, 4294901760
    %v694 = vsub.f32 %v692, %v693
    %v695 = vand.u32 %v694, 4294901760
    %696 = vmatmul.mubr.f32.gmra.mxu0 %v695
    %v697 = vpop.f32.mrf.mxu0
    %v698 = vadd.f32 %v598, %v697
    %v699 = vpop.f32.mrf.mxu0
    %700 = vdwg.mxu0
    %701 = vmatprep.subr.mxu0 0.0
    %v702 = vand.u32 %v592, 4294901760
    %v703 = vsub.f32 %v592, %v702
    %v704 = vand.u32 %v703, 4294901760
    %v705 = vsub.f32 %v703, %v704
    %v706 = vand.u32 %v705, 4294901760
    %707 = vmatpush1.msra.mxu0 %v706
    %708 = vmatprep.subr.mxu0 0.0
    %v709 = vand.u32 %v591, 4294901760
    %v710 = vsub.f32 %v591, %v709
    %v711 = vand.u32 %v710, 4294901760
    %v712 = vsub.f32 %v710, %v711
    %v713 = vand.u32 %v712, 4294901760
    %714 = vmatpush1.msra.mxu0 %v713
    %715 = vmatprep.subr.mxu0 0.0
    %v716 = vand.u32 %v590, 4294901760
    %v717 = vsub.f32 %v590, %v716
    %v718 = vand.u32 %v717, 4294901760
    %v719 = vsub.f32 %v717, %v718
    %v720 = vand.u32 %v719, 4294901760
    %721 = vmatpush1.msra.mxu0 %v720
    %722 = vmatprep.subr.mxu0 0.0
    %v723 = vand.u32 %v589, 4294901760
    %v724 = vsub.f32 %v589, %v723
    %v725 = vand.u32 %v724, 4294901760
    %v726 = vsub.f32 %v724, %v725
    %v727 = vand.u32 %v726, 4294901760
    %728 = vmatpush1.msra.mxu0 %v727
    %729 = vmatprep.subr.mxu0 0.0
    %v730 = vand.u32 %v588, 4294901760
    %v731 = vsub.f32 %v588, %v730
    %v732 = vand.u32 %v731, 4294901760
    %v733 = vsub.f32 %v731, %v732
    %v734 = vand.u32 %v733, 4294901760
    %735 = vmatpush1.msra.mxu0 %v734
    %736 = vmatprep.subr.mxu0 0.0
    %v737 = vand.u32 %v587, 4294901760
    %v738 = vsub.f32 %v587, %v737
    %v739 = vand.u32 %v738, 4294901760
    %v740 = vsub.f32 %v738, %v739
    %v741 = vand.u32 %v740, 4294901760
    %742 = vmatpush1.msra.mxu0 %v741
    %743 = vmatprep.subr.mxu0 0.0
    %v744 = vand.u32 %v586, 4294901760
    %v745 = vsub.f32 %v586, %v744
    %v746 = vand.u32 %v745, 4294901760
    %v747 = vsub.f32 %v745, %v746
    %v748 = vand.u32 %v747, 4294901760
    %749 = vmatpush1.msra.mxu0 %v748
    %750 = vmatprep.subr.mxu0 0.0
    %v751 = vand.u32 %v585, 4294901760
    %v752 = vsub.f32 %v585, %v751
    %v753 = vand.u32 %v752, 4294901760
    %v754 = vsub.f32 %v752, %v753
    %v755 = vand.u32 %v754, 4294901760
    %756 = vmatpush1.msra.mxu0 %v755
    %757 = vmatprep.subr.mxu0 0.0
    %v758 = vand.u32 %v584, 4294901760
    %v759 = vsub.f32 %v584, %v758
    %v760 = vand.u32 %v759, 4294901760
    %v761 = vsub.f32 %v759, %v760
    %v762 = vand.u32 %v761, 4294901760
    %763 = vmatpush1.msra.mxu0 %v762
    %764 = vmatprep.subr.mxu0 0.0
    %v765 = vand.u32 %v583, 4294901760
    %v766 = vsub.f32 %v583, %v765
    %v767 = vand.u32 %v766, 4294901760
    %v768 = vsub.f32 %v766, %v767
    %v769 = vand.u32 %v768, 4294901760
    %770 = vmatpush1.msra.mxu0 %v769
    %771 = vmatprep.subr.mxu0 0.0
    %v772 = vand.u32 %v582, 4294901760
    %v773 = vsub.f32 %v582, %v772
    %v774 = vand.u32 %v773, 4294901760
    %v775 = vsub.f32 %v773, %v774
    %v776 = vand.u32 %v775, 4294901760
    %777 = vmatpush1.msra.mxu0 %v776
    %778 = vmatprep.subr.mxu0 0.0
    %v779 = vand.u32 %v581, 4294901760
    %v780 = vsub.f32 %v581, %v779
    %v781 = vand.u32 %v780, 4294901760
    %v782 = vsub.f32 %v780, %v781
    %v783 = vand.u32 %v782, 4294901760
    %784 = vmatpush1.msra.mxu0 %v783
    %785 = vmatprep.subr.mxu0 0.0
    %v786 = vand.u32 %v580, 4294901760
    %v787 = vsub.f32 %v580, %v786
    %v788 = vand.u32 %v787, 4294901760
    %v789 = vsub.f32 %v787, %v788
    %v790 = vand.u32 %v789, 4294901760
    %791 = vmatpush1.msra.mxu0 %v790
    %792 = vmatprep.subr.mxu0 0.0
    %v793 = vand.u32 %v579, 4294901760
    %v794 = vsub.f32 %v579, %v793
    %v795 = vand.u32 %v794, 4294901760
    %v796 = vsub.f32 %v794, %v795
    %v797 = vand.u32 %v796, 4294901760
    %798 = vmatpush1.msra.mxu0 %v797
    %799 = vmatprep.subr.mxu0 0.0
    %v800 = vand.u32 %v578, 4294901760
    %v801 = vsub.f32 %v578, %v800
    %v802 = vand.u32 %v801, 4294901760
    %v803 = vsub.f32 %v801, %v802
    %v804 = vand.u32 %v803, 4294901760
    %805 = vmatpush1.msra.mxu0 %v804
    %806 = vmatprep.subr.mxu0 0.0
    %v807 = vand.u32 %v577, 4294901760
    %v808 = vsub.f32 %v577, %v807
    %v809 = vand.u32 %v808, 4294901760
    %v810 = vsub.f32 %v808, %v809
    %v811 = vand.u32 %v810, 4294901760
    %812 = vmatpush1.msra.mxu0 %v811
    %813 = vmatprep.subr.mxu0 0.0
    %814 = vmatpush2.msra.mxu0 0.0
    %815 = vmatprep.subr.mxu0 0.0
    %816 = vmatpush2.msra.mxu0 0.0
    %817 = vmatprep.subr.mxu0 0.0
    %818 = vmatpush2.msra.mxu0 0.0
    %819 = vmatprep.subr.mxu0 0.0
    %820 = vmatpush2.msra.mxu0 0.0
    %821 = vmatprep.subr.mxu0 0.0
    %822 = vmatpush2.msra.mxu0 0.0
    %823 = vmatprep.subr.mxu0 0.0
    %824 = vmatpush2.msra.mxu0 0.0
    %825 = vmatprep.subr.mxu0 0.0
    %826 = vmatpush2.msra.mxu0 0.0
    %827 = vmatprep.subr.mxu0 0.0
    %828 = vmatpush2.msra.mxu0 0.0
    %829 = vmatprep.subr.mxu0 0.0
    %830 = vmatpush2.msra.mxu0 0.0
    %831 = vmatprep.subr.mxu0 0.0
    %832 = vmatpush2.msra.mxu0 0.0
    %833 = vmatprep.subr.mxu0 0.0
    %834 = vmatpush2.msra.mxu0 0.0
    %835 = vmatprep.subr.mxu0 0.0
    %836 = vmatpush2.msra.mxu0 0.0
    %837 = vmatprep.subr.mxu0 0.0
    %838 = vmatpush2.msra.mxu0 0.0
    %839 = vmatprep.subr.mxu0 0.0
    %840 = vmatpush2.msra.mxu0 0.0
    %841 = vmatprep.subr.mxu0 0.0
    %842 = vmatpush2.msra.mxu0 0.0
    %843 = vmatprep.subr.mxu0 0.0
    %844 = vmatpush2.msra.mxu0 0.0
    %845 = vmatprep.mubr.f32.mxu0 0.0
    %v846 = vand.u32 %v575, 4294901760
    %847 = vmatmul.mubr.f32.gmra.mxu0 %v846
    %v848 = vpop.f32.mrf.mxu0
    %v849 = vadd.f32 %v688, %v848
    %v850 = vpop.f32.mrf.mxu0
    %851 = vmatprep.mubr.f32.mxu0 0.0
    %v852 = vand.u32 %v576, 4294901760
    %853 = vmatmul.mubr.f32.gmra.mxu0 %v852
    %v854 = vpop.f32.mrf.mxu0
    %v855 = vadd.f32 %v698, %v854
    %v856 = vpop.f32.mrf.mxu0
    %857 = vdwg.mxu0
    %858 = vmatprep.subr.mxu0 0.0
    %v859 = vand.u32 %v592, 4294901760
    %v860 = vsub.f32 %v592, %v859
    %861 = vmatpush1.msra.mxu0 %v860
    %862 = vmatprep.subr.mxu0 0.0
    %v863 = vand.u32 %v591, 4294901760
    %v864 = vsub.f32 %v591, %v863
    %865 = vmatpush1.msra.mxu0 %v864
    %866 = vmatprep.subr.mxu0 0.0
    %v867 = vand.u32 %v590, 4294901760
    %v868 = vsub.f32 %v590, %v867
    %869 = vmatpush1.msra.mxu0 %v868
    %870 = vmatprep.subr.mxu0 0.0
    %v871 = vand.u32 %v589, 4294901760
    %v872 = vsub.f32 %v589, %v871
    %873 = vmatpush1.msra.mxu0 %v872
    %874 = vmatprep.subr.mxu0 0.0
    %v875 = vand.u32 %v588, 4294901760
    %v876 = vsub.f32 %v588, %v875
    %877 = vmatpush1.msra.mxu0 %v876
    %878 = vmatprep.subr.mxu0 0.0
    %v879 = vand.u32 %v587, 4294901760
    %v880 = vsub.f32 %v587, %v879
    %881 = vmatpush1.msra.mxu0 %v880
    %882 = vmatprep.subr.mxu0 0.0
    %v883 = vand.u32 %v586, 4294901760
    %v884 = vsub.f32 %v586, %v883
    %885 = vmatpush1.msra.mxu0 %v884
    %886 = vmatprep.subr.mxu0 0.0
    %v887 = vand.u32 %v585, 4294901760
    %v888 = vsub.f32 %v585, %v887
    %889 = vmatpush1.msra.mxu0 %v888
    %890 = vmatprep.subr.mxu0 0.0
    %v891 = vand.u32 %v584, 4294901760
    %v892 = vsub.f32 %v584, %v891
    %893 = vmatpush1.msra.mxu0 %v892
    %894 = vmatprep.subr.mxu0 0.0
    %v895 = vand.u32 %v583, 4294901760
    %v896 = vsub.f32 %v583, %v895
    %897 = vmatpush1.msra.mxu0 %v896
    %898 = vmatprep.subr.mxu0 0.0
    %v899 = vand.u32 %v582, 4294901760
    %v900 = vsub.f32 %v582, %v899
    %901 = vmatpush1.msra.mxu0 %v900
    %902 = vmatprep.subr.mxu0 0.0
    %v903 = vand.u32 %v581, 4294901760
    %v904 = vsub.f32 %v581, %v903
    %905 = vmatpush1.msra.mxu0 %v904
    %906 = vmatprep.subr.mxu0 0.0
    %v907 = vand.u32 %v580, 4294901760
    %v908 = vsub.f32 %v580, %v907
    %909 = vmatpush1.msra.mxu0 %v908
    %910 = vmatprep.subr.mxu0 0.0
    %v911 = vand.u32 %v579, 4294901760
    %v912 = vsub.f32 %v579, %v911
    %913 = vmatpush1.msra.mxu0 %v912
    %914 = vmatprep.subr.mxu0 0.0
    %v915 = vand.u32 %v578, 4294901760
    %v916 = vsub.f32 %v578, %v915
    %917 = vmatpush1.msra.mxu0 %v916
    %918 = vmatprep.subr.mxu0 0.0
    %v919 = vand.u32 %v577, 4294901760
    %v920 = vsub.f32 %v577, %v919
    %921 = vmatpush1.msra.mxu0 %v920
    %922 = vmatprep.subr.mxu0 0.0
    %923 = vmatpush2.msra.mxu0 0.0
    %924 = vmatprep.subr.mxu0 0.0
    %925 = vmatpush2.msra.mxu0 0.0
    %926 = vmatprep.subr.mxu0 0.0
    %927 = vmatpush2.msra.mxu0 0.0
    %928 = vmatprep.subr.mxu0 0.0
    %929 = vmatpush2.msra.mxu0 0.0
    %930 = vmatprep.subr.mxu0 0.0
    %931 = vmatpush2.msra.mxu0 0.0
    %932 = vmatprep.subr.mxu0 0.0
    %933 = vmatpush2.msra.mxu0 0.0
    %934 = vmatprep.subr.mxu0 0.0
    %935 = vmatpush2.msra.mxu0 0.0
    %936 = vmatprep.subr.mxu0 0.0
    %937 = vmatpush2.msra.mxu0 0.0
    %938 = vmatprep.subr.mxu0 0.0
    %939 = vmatpush2.msra.mxu0 0.0
    %940 = vmatprep.subr.mxu0 0.0
    %941 = vmatpush2.msra.mxu0 0.0
    %942 = vmatprep.subr.mxu0 0.0
    %943 = vmatpush2.msra.mxu0 0.0
    %944 = vmatprep.subr.mxu0 0.0
    %945 = vmatpush2.msra.mxu0 0.0
    %946 = vmatprep.subr.mxu0 0.0
    %947 = vmatpush2.msra.mxu0 0.0
    %948 = vmatprep.subr.mxu0 0.0
    %949 = vmatpush2.msra.mxu0 0.0
    %950 = vmatprep.subr.mxu0 0.0
    %951 = vmatpush2.msra.mxu0 0.0
    %952 = vmatprep.subr.mxu0 0.0
    %953 = vmatpush2.msra.mxu0 0.0
    %954 = vmatprep.mubr.f32.mxu0 0.0
    %v955 = vand.u32 %v575, 4294901760
    %v956 = vsub.f32 %v575, %v955
    %957 = vmatmul.mubr.f32.gmra.mxu0 %v956
    %v958 = vpop.f32.mrf.mxu0
    %v959 = vadd.f32 %v849, %v958
    %v960 = vpop.f32.mrf.mxu0
    %961 = vmatprep.mubr.f32.mxu0 0.0
    %v962 = vand.u32 %v576, 4294901760
    %v963 = vsub.f32 %v576, %v962
    %964 = vmatmul.mubr.f32.gmra.mxu0 %v963
    %v965 = vpop.f32.mrf.mxu0
    %v966 = vadd.f32 %v855, %v965
    %v967 = vpop.f32.mrf.mxu0
    %968 = vdwg.mxu0
    %969 = vmatprep.subr.mxu0 0.0
    %v970 = vand.u32 %v592, 4294901760
    %971 = vmatpush1.msra.mxu0 %v970
    %972 = vmatprep.subr.mxu0 0.0
    %v973 = vand.u32 %v591, 4294901760
    %974 = vmatpush1.msra.mxu0 %v973
    %975 = vmatprep.subr.mxu0 0.0
    %v976 = vand.u32 %v590, 4294901760
    %977 = vmatpush1.msra.mxu0 %v976
    %978 = vmatprep.subr.mxu0 0.0
    %v979 = vand.u32 %v589, 4294901760
    %980 = vmatpush1.msra.mxu0 %v979
    %981 = vmatprep.subr.mxu0 0.0
    %v982 = vand.u32 %v588, 4294901760
    %983 = vmatpush1.msra.mxu0 %v982
    %984 = vmatprep.subr.mxu0 0.0
    %v985 = vand.u32 %v587, 4294901760
    %986 = vmatpush1.msra.mxu0 %v985
    %987 = vmatprep.subr.mxu0 0.0
    %v988 = vand.u32 %v586, 4294901760
    %989 = vmatpush1.msra.mxu0 %v988
    %990 = vmatprep.subr.mxu0 0.0
    %v991 = vand.u32 %v585, 4294901760
    %992 = vmatpush1.msra.mxu0 %v991
    %993 = vmatprep.subr.mxu0 0.0
    %v994 = vand.u32 %v584, 4294901760
    %995 = vmatpush1.msra.mxu0 %v994
    %996 = vmatprep.subr.mxu0 0.0
    %v997 = vand.u32 %v583, 4294901760
    %998 = vmatpush1.msra.mxu0 %v997
    %999 = vmatprep.subr.mxu0 0.0
    %v1000 = vand.u32 %v582, 4294901760
    %1001 = vmatpush1.msra.mxu0 %v1000
    %1002 = vmatprep.subr.mxu0 0.0
    %v1003 = vand.u32 %v581, 4294901760
    %1004 = vmatpush1.msra.mxu0 %v1003
    %1005 = vmatprep.subr.mxu0 0.0
    %v1006 = vand.u32 %v580, 4294901760
    %1007 = vmatpush1.msra.mxu0 %v1006
    %1008 = vmatprep.subr.mxu0 0.0
    %v1009 = vand.u32 %v579, 4294901760
    %1010 = vmatpush1.msra.mxu0 %v1009
    %1011 = vmatprep.subr.mxu0 0.0
    %v1012 = vand.u32 %v578, 4294901760
    %1013 = vmatpush1.msra.mxu0 %v1012
    %1014 = vmatprep.subr.mxu0 0.0
    %v1015 = vand.u32 %v577, 4294901760
    %1016 = vmatpush1.msra.mxu0 %v1015
    %1017 = vmatprep.subr.mxu0 0.0
    %1018 = vmatpush2.msra.mxu0 0.0
    %1019 = vmatprep.subr.mxu0 0.0
    %1020 = vmatpush2.msra.mxu0 0.0
    %1021 = vmatprep.subr.mxu0 0.0
    %1022 = vmatpush2.msra.mxu0 0.0
    %1023 = vmatprep.subr.mxu0 0.0
    %1024 = vmatpush2.msra.mxu0 0.0
    %1025 = vmatprep.subr.mxu0 0.0
    %1026 = vmatpush2.msra.mxu0 0.0
    %1027 = vmatprep.subr.mxu0 0.0
    %1028 = vmatpush2.msra.mxu0 0.0
    %1029 = vmatprep.subr.mxu0 0.0
    %1030 = vmatpush2.msra.mxu0 0.0
    %1031 = vmatprep.subr.mxu0 0.0
    %1032 = vmatpush2.msra.mxu0 0.0
    %1033 = vmatprep.subr.mxu0 0.0
    %1034 = vmatpush2.msra.mxu0 0.0
    %1035 = vmatprep.subr.mxu0 0.0
    %1036 = vmatpush2.msra.mxu0 0.0
    %1037 = vmatprep.subr.mxu0 0.0
    %1038 = vmatpush2.msra.mxu0 0.0
    %1039 = vmatprep.subr.mxu0 0.0
    %1040 = vmatpush2.msra.mxu0 0.0
    %1041 = vmatprep.subr.mxu0 0.0
    %1042 = vmatpush2.msra.mxu0 0.0
    %1043 = vmatprep.subr.mxu0 0.0
    %1044 = vmatpush2.msra.mxu0 0.0
    %1045 = vmatprep.subr.mxu0 0.0
    %1046 = vmatpush2.msra.mxu0 0.0
    %1047 = vmatprep.subr.mxu0 0.0
    %1048 = vmatpush2.msra.mxu0 0.0
    %1049 = vmatprep.mubr.f32.mxu0 0.0
    %v1050 = vand.u32 %v575, 4294901760
    %v1051 = vsub.f32 %v575, %v1050
    %v1052 = vand.u32 %v1051, 4294901760
    %1053 = vmatmul.mubr.f32.gmra.mxu0 %v1052
    %v1054 = vpop.f32.mrf.mxu0
    %v1055 = vadd.f32 %v959, %v1054
    %v1056 = vpop.f32.mrf.mxu0
    %1057 = vmatprep.mubr.f32.mxu0 0.0
    %v1058 = vand.u32 %v576, 4294901760
    %v1059 = vsub.f32 %v576, %v1058
    %v1060 = vand.u32 %v1059, 4294901760
    %1061 = vmatmul.mubr.f32.gmra.mxu0 %v1060
    %v1062 = vpop.f32.mrf.mxu0
    %v1063 = vadd.f32 %v966, %v1062
    %v1064 = vpop.f32.mrf.mxu0
    %1065 = vdwg.mxu0
    %1066 = vmatprep.subr.mxu0 0.0
    %v1067 = vand.u32 %v592, 4294901760
    %v1068 = vsub.f32 %v592, %v1067
    %v1069 = vand.u32 %v1068, 4294901760
    %1070 = vmatpush1.msra.mxu0 %v1069
    %1071 = vmatprep.subr.mxu0 0.0
    %v1072 = vand.u32 %v591, 4294901760
    %v1073 = vsub.f32 %v591, %v1072
    %v1074 = vand.u32 %v1073, 4294901760
    %1075 = vmatpush1.msra.mxu0 %v1074
    %1076 = vmatprep.subr.mxu0 0.0
    %v1077 = vand.u32 %v590, 4294901760
    %v1078 = vsub.f32 %v590, %v1077
    %v1079 = vand.u32 %v1078, 4294901760
    %1080 = vmatpush1.msra.mxu0 %v1079
    %1081 = vmatprep.subr.mxu0 0.0
    %v1082 = vand.u32 %v589, 4294901760
    %v1083 = vsub.f32 %v589, %v1082
    %v1084 = vand.u32 %v1083, 4294901760
    %1085 = vmatpush1.msra.mxu0 %v1084
    %1086 = vmatprep.subr.mxu0 0.0
    %v1087 = vand.u32 %v588, 4294901760
    %v1088 = vsub.f32 %v588, %v1087
    %v1089 = vand.u32 %v1088, 4294901760
    %1090 = vmatpush1.msra.mxu0 %v1089
    %1091 = vmatprep.subr.mxu0 0.0
    %v1092 = vand.u32 %v587, 4294901760
    %v1093 = vsub.f32 %v587, %v1092
    %v1094 = vand.u32 %v1093, 4294901760
    %1095 = vmatpush1.msra.mxu0 %v1094
    %1096 = vmatprep.subr.mxu0 0.0
    %v1097 = vand.u32 %v586, 4294901760
    %v1098 = vsub.f32 %v586, %v1097
    %v1099 = vand.u32 %v1098, 4294901760
    %1100 = vmatpush1.msra.mxu0 %v1099
    %1101 = vmatprep.subr.mxu0 0.0
    %v1102 = vand.u32 %v585, 4294901760
    %v1103 = vsub.f32 %v585, %v1102
    %v1104 = vand.u32 %v1103, 4294901760
    %1105 = vmatpush1.msra.mxu0 %v1104
    %1106 = vmatprep.subr.mxu0 0.0
    %v1107 = vand.u32 %v584, 4294901760
    %v1108 = vsub.f32 %v584, %v1107
    %v1109 = vand.u32 %v1108, 4294901760
    %1110 = vmatpush1.msra.mxu0 %v1109
    %1111 = vmatprep.subr.mxu0 0.0
    %v1112 = vand.u32 %v583, 4294901760
    %v1113 = vsub.f32 %v583, %v1112
    %v1114 = vand.u32 %v1113, 4294901760
    %1115 = vmatpush1.msra.mxu0 %v1114
    %1116 = vmatprep.subr.mxu0 0.0
    %v1117 = vand.u32 %v582, 4294901760
    %v1118 = vsub.f32 %v582, %v1117
    %v1119 = vand.u32 %v1118, 4294901760
    %1120 = vmatpush1.msra.mxu0 %v1119
    %1121 = vmatprep.subr.mxu0 0.0
    %v1122 = vand.u32 %v581, 4294901760
    %v1123 = vsub.f32 %v581, %v1122
    %v1124 = vand.u32 %v1123, 4294901760
    %1125 = vmatpush1.msra.mxu0 %v1124
    %1126 = vmatprep.subr.mxu0 0.0
    %v1127 = vand.u32 %v580, 4294901760
    %v1128 = vsub.f32 %v580, %v1127
    %v1129 = vand.u32 %v1128, 4294901760
    %1130 = vmatpush1.msra.mxu0 %v1129
    %1131 = vmatprep.subr.mxu0 0.0
    %v1132 = vand.u32 %v579, 4294901760
    %v1133 = vsub.f32 %v579, %v1132
    %v1134 = vand.u32 %v1133, 4294901760
    %1135 = vmatpush1.msra.mxu0 %v1134
    %1136 = vmatprep.subr.mxu0 0.0
    %v1137 = vand.u32 %v578, 4294901760
    %v1138 = vsub.f32 %v578, %v1137
    %v1139 = vand.u32 %v1138, 4294901760
    %1140 = vmatpush1.msra.mxu0 %v1139
    %1141 = vmatprep.subr.mxu0 0.0
    %v1142 = vand.u32 %v577, 4294901760
    %v1143 = vsub.f32 %v577, %v1142
    %v1144 = vand.u32 %v1143, 4294901760
    %1145 = vmatpush1.msra.mxu0 %v1144
    %1146 = vmatprep.subr.mxu0 0.0
    %1147 = vmatpush2.msra.mxu0 0.0
    %1148 = vmatprep.subr.mxu0 0.0
    %1149 = vmatpush2.msra.mxu0 0.0
    %1150 = vmatprep.subr.mxu0 0.0
    %1151 = vmatpush2.msra.mxu0 0.0
    %1152 = vmatprep.subr.mxu0 0.0
    %1153 = vmatpush2.msra.mxu0 0.0
    %1154 = vmatprep.subr.mxu0 0.0
    %1155 = vmatpush2.msra.mxu0 0.0
    %1156 = vmatprep.subr.mxu0 0.0
    %1157 = vmatpush2.msra.mxu0 0.0
    %1158 = vmatprep.subr.mxu0 0.0
    %1159 = vmatpush2.msra.mxu0 0.0
    %1160 = vmatprep.subr.mxu0 0.0
    %1161 = vmatpush2.msra.mxu0 0.0
    %1162 = vmatprep.subr.mxu0 0.0
    %1163 = vmatpush2.msra.mxu0 0.0
    %1164 = vmatprep.subr.mxu0 0.0
    %1165 = vmatpush2.msra.mxu0 0.0
    %1166 = vmatprep.subr.mxu0 0.0
    %1167 = vmatpush2.msra.mxu0 0.0
    %1168 = vmatprep.subr.mxu0 0.0
    %1169 = vmatpush2.msra.mxu0 0.0
    %1170 = vmatprep.subr.mxu0 0.0
    %1171 = vmatpush2.msra.mxu0 0.0
    %1172 = vmatprep.subr.mxu0 0.0
    %1173 = vmatpush2.msra.mxu0 0.0
    %1174 = vmatprep.subr.mxu0 0.0
    %1175 = vmatpush2.msra.mxu0 0.0
    %1176 = vmatprep.subr.mxu0 0.0
    %1177 = vmatpush2.msra.mxu0 0.0
    %1178 = vmatprep.mubr.f32.mxu0 0.0
    %v1179 = vand.u32 %v575, 4294901760
    %1180 = vmatmul.mubr.f32.gmra.mxu0 %v1179
    %v1181 = vpop.f32.mrf.mxu0
    %v1182 = vadd.f32 %v1055, %v1181
    %v1183 = vpop.f32.mrf.mxu0
    %1184 = vmatprep.mubr.f32.mxu0 0.0
    %v1185 = vand.u32 %v576, 4294901760
    %1186 = vmatmul.mubr.f32.gmra.mxu0 %v1185
    %v1187 = vpop.f32.mrf.mxu0
    %v1188 = vadd.f32 %v1063, %v1187
    %v1189 = vpop.f32.mrf.mxu0
    %1190 = vdwg.mxu0
    %1191 = vmatprep.subr.mxu0 0.0
    %v1192 = vand.u32 %v592, 4294901760
    %1193 = vmatpush1.msra.mxu0 %v1192
    %1194 = vmatprep.subr.mxu0 0.0
    %v1195 = vand.u32 %v591, 4294901760
    %1196 = vmatpush1.msra.mxu0 %v1195
    %1197 = vmatprep.subr.mxu0 0.0
    %v1198 = vand.u32 %v590, 4294901760
    %1199 = vmatpush1.msra.mxu0 %v1198
    %1200 = vmatprep.subr.mxu0 0.0
    %v1201 = vand.u32 %v589, 4294901760
    %1202 = vmatpush1.msra.mxu0 %v1201
    %1203 = vmatprep.subr.mxu0 0.0
    %v1204 = vand.u32 %v588, 4294901760
    %1205 = vmatpush1.msra.mxu0 %v1204
    %1206 = vmatprep.subr.mxu0 0.0
    %v1207 = vand.u32 %v587, 4294901760
    %1208 = vmatpush1.msra.mxu0 %v1207
    %1209 = vmatprep.subr.mxu0 0.0
    %v1210 = vand.u32 %v586, 4294901760
    %1211 = vmatpush1.msra.mxu0 %v1210
    %1212 = vmatprep.subr.mxu0 0.0
    %v1213 = vand.u32 %v585, 4294901760
    %1214 = vmatpush1.msra.mxu0 %v1213
    %1215 = vmatprep.subr.mxu0 0.0
    %v1216 = vand.u32 %v584, 4294901760
    %1217 = vmatpush1.msra.mxu0 %v1216
    %1218 = vmatprep.subr.mxu0 0.0
    %v1219 = vand.u32 %v583, 4294901760
    %1220 = vmatpush1.msra.mxu0 %v1219
    %1221 = vmatprep.subr.mxu0 0.0
    %v1222 = vand.u32 %v582, 4294901760
    %1223 = vmatpush1.msra.mxu0 %v1222
    %1224 = vmatprep.subr.mxu0 0.0
    %v1225 = vand.u32 %v581, 4294901760
    %1226 = vmatpush1.msra.mxu0 %v1225
    %1227 = vmatprep.subr.mxu0 0.0
    %v1228 = vand.u32 %v580, 4294901760
    %1229 = vmatpush1.msra.mxu0 %v1228
    %1230 = vmatprep.subr.mxu0 0.0
    %v1231 = vand.u32 %v579, 4294901760
    %1232 = vmatpush1.msra.mxu0 %v1231
    %1233 = vmatprep.subr.mxu0 0.0
    %v1234 = vand.u32 %v578, 4294901760
    %1235 = vmatpush1.msra.mxu0 %v1234
    %1236 = vmatprep.subr.mxu0 0.0
    %v1237 = vand.u32 %v577, 4294901760
    %1238 = vmatpush1.msra.mxu0 %v1237
    %1239 = vmatprep.subr.mxu0 0.0
    %1240 = vmatpush2.msra.mxu0 0.0
    %1241 = vmatprep.subr.mxu0 0.0
    %1242 = vmatpush2.msra.mxu0 0.0
    %1243 = vmatprep.subr.mxu0 0.0
    %1244 = vmatpush2.msra.mxu0 0.0
    %1245 = vmatprep.subr.mxu0 0.0
    %1246 = vmatpush2.msra.mxu0 0.0
    %1247 = vmatprep.subr.mxu0 0.0
    %1248 = vmatpush2.msra.mxu0 0.0
    %1249 = vmatprep.subr.mxu0 0.0
    %1250 = vmatpush2.msra.mxu0 0.0
    %1251 = vmatprep.subr.mxu0 0.0
    %1252 = vmatpush2.msra.mxu0 0.0
    %1253 = vmatprep.subr.mxu0 0.0
    %1254 = vmatpush2.msra.mxu0 0.0
    %1255 = vmatprep.subr.mxu0 0.0
    %1256 = vmatpush2.msra.mxu0 0.0
    %1257 = vmatprep.subr.mxu0 0.0
    %1258 = vmatpush2.msra.mxu0 0.0
    %1259 = vmatprep.subr.mxu0 0.0
    %1260 = vmatpush2.msra.mxu0 0.0
    %1261 = vmatprep.subr.mxu0 0.0
    %1262 = vmatpush2.msra.mxu0 0.0
    %1263 = vmatprep.subr.mxu0 0.0
    %1264 = vmatpush2.msra.mxu0 0.0
    %1265 = vmatprep.subr.mxu0 0.0
    %1266 = vmatpush2.msra.mxu0 0.0
    %1267 = vmatprep.subr.mxu0 0.0
    %1268 = vmatpush2.msra.mxu0 0.0
    %1269 = vmatprep.subr.mxu0 0.0
    %1270 = vmatpush2.msra.mxu0 0.0
    %1271 = vmatprep.mubr.f32.mxu0 0.0
    %v1272 = vand.u32 %v575, 4294901760
    %1273 = vmatmul.mubr.f32.gmra.mxu0 %v1272
    %v1274 = vpop.f32.mrf.mxu0
    %v1275 = vadd.f32 %v1182, %v1274
    %v1276 = vpop.f32.mrf.mxu0
    %1277 = vmatprep.mubr.f32.mxu0 0.0
    %v1278 = vand.u32 %v576, 4294901760
    %1279 = vmatmul.mubr.f32.gmra.mxu0 %v1278
    %v1280 = vpop.f32.mrf.mxu0
    %v1281 = vadd.f32 %v1188, %v1280
    %v1282 = vpop.f32.mrf.mxu0
    %1283 = vdwg.mxu0
    %v1284 = vmax.f32 %v1275, 0.0
    %v1285 = vmax.f32 %v1281, 0.0
    %v1286 = vld [vmem:[%s5] sm:$0xff]
    %v1287 = vld [vmem:[%s5 + $0x8] sm:$0xff]
    %v1288 = vld [vmem:[%s5 + $0x10] sm:$0xff]
    %v1289 = vld [vmem:[%s5 + $0x18] sm:$0xff]
    %v1290 = vld [vmem:[%s5 + $0x20] sm:$0xff]
    %v1291 = vld [vmem:[%s5 + $0x28] sm:$0xff]
    %v1292 = vld [vmem:[%s5 + $0x30] sm:$0xff]
    %v1293 = vld [vmem:[%s5 + $0x38] sm:$0xff]
    %v1294 = vld [vmem:[%s5 + $0x40] sm:$0xff]
    %v1295 = vld [vmem:[%s5 + $0x48] sm:$0xff]
    %v1296 = vld [vmem:[%s5 + $0x50] sm:$0xff]
    %v1297 = vld [vmem:[%s5 + $0x58] sm:$0xff]
    %v1298 = vld [vmem:[%s5 + $0x60] sm:$0xff]
    %v1299 = vld [vmem:[%s5 + $0x68] sm:$0xff]
    %v1300 = vld [vmem:[%s5 + $0x70] sm:$0xff]
    %v1301 = vld [vmem:[%s5 + $0x78] sm:$0xff]
    %v1302 = vld [vmem:[%s6] sm:$0x1]
    %v1304 = vlaneseq
    %v1305 = vshrl.u32 %v1304, 7
    %v1306 = vsub.s32 0, %v1305
    %v1307 = vrot.slane %v1302, %v1306
    %1309 = vmatprep.subr.mxu0 0.0
    %v1310 = vand.u32 %v1301, 4294901760
    %1311 = vmatpush1.msra.mxu0 %v1310
    %1312 = vmatprep.subr.mxu0 0.0
    %v1313 = vand.u32 %v1300, 4294901760
    %1314 = vmatpush1.msra.mxu0 %v1313
    %1315 = vmatprep.subr.mxu0 0.0
    %v1316 = vand.u32 %v1299, 4294901760
    %1317 = vmatpush1.msra.mxu0 %v1316
    %1318 = vmatprep.subr.mxu0 0.0
    %v1319 = vand.u32 %v1298, 4294901760
    %1320 = vmatpush1.msra.mxu0 %v1319
    %1321 = vmatprep.subr.mxu0 0.0
    %v1322 = vand.u32 %v1297, 4294901760
    %1323 = vmatpush1.msra.mxu0 %v1322
    %1324 = vmatprep.subr.mxu0 0.0
    %v1325 = vand.u32 %v1296, 4294901760
    %1326 = vmatpush1.msra.mxu0 %v1325
    %1327 = vmatprep.subr.mxu0 0.0
    %v1328 = vand.u32 %v1295, 4294901760
    %1329 = vmatpush1.msra.mxu0 %v1328
    %1330 = vmatprep.subr.mxu0 0.0
    %v1331 = vand.u32 %v1294, 4294901760
    %1332 = vmatpush1.msra.mxu0 %v1331
    %1333 = vmatprep.subr.mxu0 0.0
    %v1334 = vand.u32 %v1293, 4294901760
    %1335 = vmatpush1.msra.mxu0 %v1334
    %1336 = vmatprep.subr.mxu0 0.0
    %v1337 = vand.u32 %v1292, 4294901760
    %1338 = vmatpush1.msra.mxu0 %v1337
    %1339 = vmatprep.subr.mxu0 0.0
    %v1340 = vand.u32 %v1291, 4294901760
    %1341 = vmatpush1.msra.mxu0 %v1340
    %1342 = vmatprep.subr.mxu0 0.0
    %v1343 = vand.u32 %v1290, 4294901760
    %1344 = vmatpush1.msra.mxu0 %v1343
    %1345 = vmatprep.subr.mxu0 0.0
    %v1346 = vand.u32 %v1289, 4294901760
    %1347 = vmatpush1.msra.mxu0 %v1346
    %1348 = vmatprep.subr.mxu0 0.0
    %v1349 = vand.u32 %v1288, 4294901760
    %1350 = vmatpush1.msra.mxu0 %v1349
    %1351 = vmatprep.subr.mxu0 0.0
    %v1352 = vand.u32 %v1287, 4294901760
    %1353 = vmatpush1.msra.mxu0 %v1352
    %1354 = vmatprep.subr.mxu0 0.0
    %v1355 = vand.u32 %v1286, 4294901760
    %1356 = vmatpush1.msra.mxu0 %v1355
    %1357 = vmatprep.subr.mxu0 0.0
    %1358 = vmatpush2.msra.mxu0 0.0
    %1359 = vmatprep.subr.mxu0 0.0
    %1360 = vmatpush2.msra.mxu0 0.0
    %1361 = vmatprep.subr.mxu0 0.0
    %1362 = vmatpush2.msra.mxu0 0.0
    %1363 = vmatprep.subr.mxu0 0.0
    %1364 = vmatpush2.msra.mxu0 0.0
    %1365 = vmatprep.subr.mxu0 0.0
    %1366 = vmatpush2.msra.mxu0 0.0
    %1367 = vmatprep.subr.mxu0 0.0
    %1368 = vmatpush2.msra.mxu0 0.0
    %1369 = vmatprep.subr.mxu0 0.0
    %1370 = vmatpush2.msra.mxu0 0.0
    %1371 = vmatprep.subr.mxu0 0.0
    %1372 = vmatpush2.msra.mxu0 0.0
    %1373 = vmatprep.subr.mxu0 0.0
    %1374 = vmatpush2.msra.mxu0 0.0
    %1375 = vmatprep.subr.mxu0 0.0
    %1376 = vmatpush2.msra.mxu0 0.0
    %1377 = vmatprep.subr.mxu0 0.0
    %1378 = vmatpush2.msra.mxu0 0.0
    %1379 = vmatprep.subr.mxu0 0.0
    %1380 = vmatpush2.msra.mxu0 0.0
    %1381 = vmatprep.subr.mxu0 0.0
    %1382 = vmatpush2.msra.mxu0 0.0
    %1383 = vmatprep.subr.mxu0 0.0
    %1384 = vmatpush2.msra.mxu0 0.0
    %1385 = vmatprep.subr.mxu0 0.0
    %1386 = vmatpush2.msra.mxu0 0.0
    %1387 = vmatprep.subr.mxu0 0.0
    %1388 = vmatpush2.msra.mxu0 0.0
    %1389 = vmatprep.mubr.f32.mxu0 0.0
    %v1390 = vand.u32 %v1284, 4294901760
    %v1391 = vsub.f32 %v1284, %v1390
    %v1392 = vand.u32 %v1391, 4294901760
    %v1393 = vsub.f32 %v1391, %v1392
    %v1394 = vand.u32 %v1393, 4294901760
    %1395 = vmatmul.mubr.f32.gmra.mxu0 %v1394
    %v1396 = vpop.f32.mrf.mxu0
    %v1397 = vadd.f32 %v1307, %v1396
    %v1398 = vpop.f32.mrf.mxu0
    %1399 = vmatprep.mubr.f32.mxu0 0.0
    %v1400 = vand.u32 %v1285, 4294901760
    %v1401 = vsub.f32 %v1285, %v1400
    %v1402 = vand.u32 %v1401, 4294901760
    %v1403 = vsub.f32 %v1401, %v1402
    %v1404 = vand.u32 %v1403, 4294901760
    %1405 = vmatmul.mubr.f32.gmra.mxu0 %v1404
    %v1406 = vpop.f32.mrf.mxu0
    %v1407 = vadd.f32 %v1307, %v1406
    %v1408 = vpop.f32.mrf.mxu0
    %1409 = vdwg.mxu0
    %1410 = vmatprep.subr.mxu0 0.0
    %v1411 = vand.u32 %v1301, 4294901760
    %v1412 = vsub.f32 %v1301, %v1411
    %v1413 = vand.u32 %v1412, 4294901760
    %v1414 = vsub.f32 %v1412, %v1413
    %v1415 = vand.u32 %v1414, 4294901760
    %1416 = vmatpush1.msra.mxu0 %v1415
    %1417 = vmatprep.subr.mxu0 0.0
    %v1418 = vand.u32 %v1300, 4294901760
    %v1419 = vsub.f32 %v1300, %v1418
    %v1420 = vand.u32 %v1419, 4294901760
    %v1421 = vsub.f32 %v1419, %v1420
    %v1422 = vand.u32 %v1421, 4294901760
    %1423 = vmatpush1.msra.mxu0 %v1422
    %1424 = vmatprep.subr.mxu0 0.0
    %v1425 = vand.u32 %v1299, 4294901760
    %v1426 = vsub.f32 %v1299, %v1425
    %v1427 = vand.u32 %v1426, 4294901760
    %v1428 = vsub.f32 %v1426, %v1427
    %v1429 = vand.u32 %v1428, 4294901760
    %1430 = vmatpush1.msra.mxu0 %v1429
    %1431 = vmatprep.subr.mxu0 0.0
    %v1432 = vand.u32 %v1298, 4294901760
    %v1433 = vsub.f32 %v1298, %v1432
    %v1434 = vand.u32 %v1433, 4294901760
    %v1435 = vsub.f32 %v1433, %v1434
    %v1436 = vand.u32 %v1435, 4294901760
    %1437 = vmatpush1.msra.mxu0 %v1436
    %1438 = vmatprep.subr.mxu0 0.0
    %v1439 = vand.u32 %v1297, 4294901760
    %v1440 = vsub.f32 %v1297, %v1439
    %v1441 = vand.u32 %v1440, 4294901760
    %v1442 = vsub.f32 %v1440, %v1441
    %v1443 = vand.u32 %v1442, 4294901760
    %1444 = vmatpush1.msra.mxu0 %v1443
    %1445 = vmatprep.subr.mxu0 0.0
    %v1446 = vand.u32 %v1296, 4294901760
    %v1447 = vsub.f32 %v1296, %v1446
    %v1448 = vand.u32 %v1447, 4294901760
    %v1449 = vsub.f32 %v1447, %v1448
    %v1450 = vand.u32 %v1449, 4294901760
    %1451 = vmatpush1.msra.mxu0 %v1450
    %1452 = vmatprep.subr.mxu0 0.0
    %v1453 = vand.u32 %v1295, 4294901760
    %v1454 = vsub.f32 %v1295, %v1453
    %v1455 = vand.u32 %v1454, 4294901760
    %v1456 = vsub.f32 %v1454, %v1455
    %v1457 = vand.u32 %v1456, 4294901760
    %1458 = vmatpush1.msra.mxu0 %v1457
    %1459 = vmatprep.subr.mxu0 0.0
    %v1460 = vand.u32 %v1294, 4294901760
    %v1461 = vsub.f32 %v1294, %v1460
    %v1462 = vand.u32 %v1461, 4294901760
    %v1463 = vsub.f32 %v1461, %v1462
    %v1464 = vand.u32 %v1463, 4294901760
    %1465 = vmatpush1.msra.mxu0 %v1464
    %1466 = vmatprep.subr.mxu0 0.0
    %v1467 = vand.u32 %v1293, 4294901760
    %v1468 = vsub.f32 %v1293, %v1467
    %v1469 = vand.u32 %v1468, 4294901760
    %v1470 = vsub.f32 %v1468, %v1469
    %v1471 = vand.u32 %v1470, 4294901760
    %1472 = vmatpush1.msra.mxu0 %v1471
    %1473 = vmatprep.subr.mxu0 0.0
    %v1474 = vand.u32 %v1292, 4294901760
    %v1475 = vsub.f32 %v1292, %v1474
    %v1476 = vand.u32 %v1475, 4294901760
    %v1477 = vsub.f32 %v1475, %v1476
    %v1478 = vand.u32 %v1477, 4294901760
    %1479 = vmatpush1.msra.mxu0 %v1478
    %1480 = vmatprep.subr.mxu0 0.0
    %v1481 = vand.u32 %v1291, 4294901760
    %v1482 = vsub.f32 %v1291, %v1481
    %v1483 = vand.u32 %v1482, 4294901760
    %v1484 = vsub.f32 %v1482, %v1483
    %v1485 = vand.u32 %v1484, 4294901760
    %1486 = vmatpush1.msra.mxu0 %v1485
    %1487 = vmatprep.subr.mxu0 0.0
    %v1488 = vand.u32 %v1290, 4294901760
    %v1489 = vsub.f32 %v1290, %v1488
    %v1490 = vand.u32 %v1489, 4294901760
    %v1491 = vsub.f32 %v1489, %v1490
    %v1492 = vand.u32 %v1491, 4294901760
    %1493 = vmatpush1.msra.mxu0 %v1492
    %1494 = vmatprep.subr.mxu0 0.0
    %v1495 = vand.u32 %v1289, 4294901760
    %v1496 = vsub.f32 %v1289, %v1495
    %v1497 = vand.u32 %v1496, 4294901760
    %v1498 = vsub.f32 %v1496, %v1497
    %v1499 = vand.u32 %v1498, 4294901760
    %1500 = vmatpush1.msra.mxu0 %v1499
    %1501 = vmatprep.subr.mxu0 0.0
    %v1502 = vand.u32 %v1288, 4294901760
    %v1503 = vsub.f32 %v1288, %v1502
    %v1504 = vand.u32 %v1503, 4294901760
    %v1505 = vsub.f32 %v1503, %v1504
    %v1506 = vand.u32 %v1505, 4294901760
    %1507 = vmatpush1.msra.mxu0 %v1506
    %1508 = vmatprep.subr.mxu0 0.0
    %v1509 = vand.u32 %v1287, 4294901760
    %v1510 = vsub.f32 %v1287, %v1509
    %v1511 = vand.u32 %v1510, 4294901760
    %v1512 = vsub.f32 %v1510, %v1511
    %v1513 = vand.u32 %v1512, 4294901760
    %1514 = vmatpush1.msra.mxu0 %v1513
    %1515 = vmatprep.subr.mxu0 0.0
    %v1516 = vand.u32 %v1286, 4294901760
    %v1517 = vsub.f32 %v1286, %v1516
    %v1518 = vand.u32 %v1517, 4294901760
    %v1519 = vsub.f32 %v1517, %v1518
    %v1520 = vand.u32 %v1519, 4294901760
    %1521 = vmatpush1.msra.mxu0 %v1520
    %1522 = vmatprep.subr.mxu0 0.0
    %1523 = vmatpush2.msra.mxu0 0.0
    %1524 = vmatprep.subr.mxu0 0.0
    %1525 = vmatpush2.msra.mxu0 0.0
    %1526 = vmatprep.subr.mxu0 0.0
    %1527 = vmatpush2.msra.mxu0 0.0
    %1528 = vmatprep.subr.mxu0 0.0
    %1529 = vmatpush2.msra.mxu0 0.0
    %1530 = vmatprep.subr.mxu0 0.0
    %1531 = vmatpush2.msra.mxu0 0.0
    %1532 = vmatprep.subr.mxu0 0.0
    %1533 = vmatpush2.msra.mxu0 0.0
    %1534 = vmatprep.subr.mxu0 0.0
    %1535 = vmatpush2.msra.mxu0 0.0
    %1536 = vmatprep.subr.mxu0 0.0
    %1537 = vmatpush2.msra.mxu0 0.0
    %1538 = vmatprep.subr.mxu0 0.0
    %1539 = vmatpush2.msra.mxu0 0.0
    %1540 = vmatprep.subr.mxu0 0.0
    %1541 = vmatpush2.msra.mxu0 0.0
    %1542 = vmatprep.subr.mxu0 0.0
    %1543 = vmatpush2.msra.mxu0 0.0
    %1544 = vmatprep.subr.mxu0 0.0
    %1545 = vmatpush2.msra.mxu0 0.0
    %1546 = vmatprep.subr.mxu0 0.0
    %1547 = vmatpush2.msra.mxu0 0.0
    %1548 = vmatprep.subr.mxu0 0.0
    %1549 = vmatpush2.msra.mxu0 0.0
    %1550 = vmatprep.subr.mxu0 0.0
    %1551 = vmatpush2.msra.mxu0 0.0
    %1552 = vmatprep.subr.mxu0 0.0
    %1553 = vmatpush2.msra.mxu0 0.0
    %1554 = vmatprep.mubr.f32.mxu0 0.0
    %v1555 = vand.u32 %v1284, 4294901760
    %1556 = vmatmul.mubr.f32.gmra.mxu0 %v1555
    %v1557 = vpop.f32.mrf.mxu0
    %v1558 = vadd.f32 %v1397, %v1557
    %v1559 = vpop.f32.mrf.mxu0
    %1560 = vmatprep.mubr.f32.mxu0 0.0
    %v1561 = vand.u32 %v1285, 4294901760
    %1562 = vmatmul.mubr.f32.gmra.mxu0 %v1561
    %v1563 = vpop.f32.mrf.mxu0
    %v1564 = vadd.f32 %v1407, %v1563
    %v1565 = vpop.f32.mrf.mxu0
    %1566 = vdwg.mxu0
    %1567 = vmatprep.subr.mxu0 0.0
    %v1568 = vand.u32 %v1301, 4294901760
    %v1569 = vsub.f32 %v1301, %v1568
    %1570 = vmatpush1.msra.mxu0 %v1569
    %1571 = vmatprep.subr.mxu0 0.0
    %v1572 = vand.u32 %v1300, 4294901760
    %v1573 = vsub.f32 %v1300, %v1572
    %1574 = vmatpush1.msra.mxu0 %v1573
    %1575 = vmatprep.subr.mxu0 0.0
    %v1576 = vand.u32 %v1299, 4294901760
    %v1577 = vsub.f32 %v1299, %v1576
    %1578 = vmatpush1.msra.mxu0 %v1577
    %1579 = vmatprep.subr.mxu0 0.0
    %v1580 = vand.u32 %v1298, 4294901760
    %v1581 = vsub.f32 %v1298, %v1580
    %1582 = vmatpush1.msra.mxu0 %v1581
    %1583 = vmatprep.subr.mxu0 0.0
    %v1584 = vand.u32 %v1297, 4294901760
    %v1585 = vsub.f32 %v1297, %v1584
    %1586 = vmatpush1.msra.mxu0 %v1585
    %1587 = vmatprep.subr.mxu0 0.0
    %v1588 = vand.u32 %v1296, 4294901760
    %v1589 = vsub.f32 %v1296, %v1588
    %1590 = vmatpush1.msra.mxu0 %v1589
    %1591 = vmatprep.subr.mxu0 0.0
    %v1592 = vand.u32 %v1295, 4294901760
    %v1593 = vsub.f32 %v1295, %v1592
    %1594 = vmatpush1.msra.mxu0 %v1593
    %1595 = vmatprep.subr.mxu0 0.0
    %v1596 = vand.u32 %v1294, 4294901760
    %v1597 = vsub.f32 %v1294, %v1596
    %1598 = vmatpush1.msra.mxu0 %v1597
    %1599 = vmatprep.subr.mxu0 0.0
    %v1600 = vand.u32 %v1293, 4294901760
    %v1601 = vsub.f32 %v1293, %v1600
    %1602 = vmatpush1.msra.mxu0 %v1601
    %1603 = vmatprep.subr.mxu0 0.0
    %v1604 = vand.u32 %v1292, 4294901760
    %v1605 = vsub.f32 %v1292, %v1604
    %1606 = vmatpush1.msra.mxu0 %v1605
    %1607 = vmatprep.subr.mxu0 0.0
    %v1608 = vand.u32 %v1291, 4294901760
    %v1609 = vsub.f32 %v1291, %v1608
    %1610 = vmatpush1.msra.mxu0 %v1609
    %1611 = vmatprep.subr.mxu0 0.0
    %v1612 = vand.u32 %v1290, 4294901760
    %v1613 = vsub.f32 %v1290, %v1612
    %1614 = vmatpush1.msra.mxu0 %v1613
    %1615 = vmatprep.subr.mxu0 0.0
    %v1616 = vand.u32 %v1289, 4294901760
    %v1617 = vsub.f32 %v1289, %v1616
    %1618 = vmatpush1.msra.mxu0 %v1617
    %1619 = vmatprep.subr.mxu0 0.0
    %v1620 = vand.u32 %v1288, 4294901760
    %v1621 = vsub.f32 %v1288, %v1620
    %1622 = vmatpush1.msra.mxu0 %v1621
    %1623 = vmatprep.subr.mxu0 0.0
    %v1624 = vand.u32 %v1287, 4294901760
    %v1625 = vsub.f32 %v1287, %v1624
    %1626 = vmatpush1.msra.mxu0 %v1625
    %1627 = vmatprep.subr.mxu0 0.0
    %v1628 = vand.u32 %v1286, 4294901760
    %v1629 = vsub.f32 %v1286, %v1628
    %1630 = vmatpush1.msra.mxu0 %v1629
    %1631 = vmatprep.subr.mxu0 0.0
    %1632 = vmatpush2.msra.mxu0 0.0
    %1633 = vmatprep.subr.mxu0 0.0
    %1634 = vmatpush2.msra.mxu0 0.0
    %1635 = vmatprep.subr.mxu0 0.0
    %1636 = vmatpush2.msra.mxu0 0.0
    %1637 = vmatprep.subr.mxu0 0.0
    %1638 = vmatpush2.msra.mxu0 0.0
    %1639 = vmatprep.subr.mxu0 0.0
    %1640 = vmatpush2.msra.mxu0 0.0
    %1641 = vmatprep.subr.mxu0 0.0
    %1642 = vmatpush2.msra.mxu0 0.0
    %1643 = vmatprep.subr.mxu0 0.0
    %1644 = vmatpush2.msra.mxu0 0.0
    %1645 = vmatprep.subr.mxu0 0.0
    %1646 = vmatpush2.msra.mxu0 0.0
    %1647 = vmatprep.subr.mxu0 0.0
    %1648 = vmatpush2.msra.mxu0 0.0
    %1649 = vmatprep.subr.mxu0 0.0
    %1650 = vmatpush2.msra.mxu0 0.0
    %1651 = vmatprep.subr.mxu0 0.0
    %1652 = vmatpush2.msra.mxu0 0.0
    %1653 = vmatprep.subr.mxu0 0.0
    %1654 = vmatpush2.msra.mxu0 0.0
    %1655 = vmatprep.subr.mxu0 0.0
    %1656 = vmatpush2.msra.mxu0 0.0
    %1657 = vmatprep.subr.mxu0 0.0
    %1658 = vmatpush2.msra.mxu0 0.0
    %1659 = vmatprep.subr.mxu0 0.0
    %1660 = vmatpush2.msra.mxu0 0.0
    %1661 = vmatprep.subr.mxu0 0.0
    %1662 = vmatpush2.msra.mxu0 0.0
    %1663 = vmatprep.mubr.f32.mxu0 0.0
    %v1664 = vand.u32 %v1284, 4294901760
    %v1665 = vsub.f32 %v1284, %v1664
    %1666 = vmatmul.mubr.f32.gmra.mxu0 %v1665
    %v1667 = vpop.f32.mrf.mxu0
    %v1668 = vadd.f32 %v1558, %v1667
    %v1669 = vpop.f32.mrf.mxu0
    %1670 = vmatprep.mubr.f32.mxu0 0.0
    %v1671 = vand.u32 %v1285, 4294901760
    %v1672 = vsub.f32 %v1285, %v1671
    %1673 = vmatmul.mubr.f32.gmra.mxu0 %v1672
    %v1674 = vpop.f32.mrf.mxu0
    %v1675 = vadd.f32 %v1564, %v1674
    %v1676 = vpop.f32.mrf.mxu0
    %1677 = vdwg.mxu0
    %1678 = vmatprep.subr.mxu0 0.0
    %v1679 = vand.u32 %v1301, 4294901760
    %1680 = vmatpush1.msra.mxu0 %v1679
    %1681 = vmatprep.subr.mxu0 0.0
    %v1682 = vand.u32 %v1300, 4294901760
    %1683 = vmatpush1.msra.mxu0 %v1682
    %1684 = vmatprep.subr.mxu0 0.0
    %v1685 = vand.u32 %v1299, 4294901760
    %1686 = vmatpush1.msra.mxu0 %v1685
    %1687 = vmatprep.subr.mxu0 0.0
    %v1688 = vand.u32 %v1298, 4294901760
    %1689 = vmatpush1.msra.mxu0 %v1688
    %1690 = vmatprep.subr.mxu0 0.0
    %v1691 = vand.u32 %v1297, 4294901760
    %1692 = vmatpush1.msra.mxu0 %v1691
    %1693 = vmatprep.subr.mxu0 0.0
    %v1694 = vand.u32 %v1296, 4294901760
    %1695 = vmatpush1.msra.mxu0 %v1694
    %1696 = vmatprep.subr.mxu0 0.0
    %v1697 = vand.u32 %v1295, 4294901760
    %1698 = vmatpush1.msra.mxu0 %v1697
    %1699 = vmatprep.subr.mxu0 0.0
    %v1700 = vand.u32 %v1294, 4294901760
    %1701 = vmatpush1.msra.mxu0 %v1700
    %1702 = vmatprep.subr.mxu0 0.0
    %v1703 = vand.u32 %v1293, 4294901760
    %1704 = vmatpush1.msra.mxu0 %v1703
    %1705 = vmatprep.subr.mxu0 0.0
    %v1706 = vand.u32 %v1292, 4294901760
    %1707 = vmatpush1.msra.mxu0 %v1706
    %1708 = vmatprep.subr.mxu0 0.0
    %v1709 = vand.u32 %v1291, 4294901760
    %1710 = vmatpush1.msra.mxu0 %v1709
    %1711 = vmatprep.subr.mxu0 0.0
    %v1712 = vand.u32 %v1290, 4294901760
    %1713 = vmatpush1.msra.mxu0 %v1712
    %1714 = vmatprep.subr.mxu0 0.0
    %v1715 = vand.u32 %v1289, 4294901760
    %1716 = vmatpush1.msra.mxu0 %v1715
    %1717 = vmatprep.subr.mxu0 0.0
    %v1718 = vand.u32 %v1288, 4294901760
    %1719 = vmatpush1.msra.mxu0 %v1718
    %1720 = vmatprep.subr.mxu0 0.0
    %v1721 = vand.u32 %v1287, 4294901760
    %1722 = vmatpush1.msra.mxu0 %v1721
    %1723 = vmatprep.subr.mxu0 0.0
    %v1724 = vand.u32 %v1286, 4294901760
    %1725 = vmatpush1.msra.mxu0 %v1724
    %1726 = vmatprep.subr.mxu0 0.0
    %1727 = vmatpush2.msra.mxu0 0.0
    %1728 = vmatprep.subr.mxu0 0.0
    %1729 = vmatpush2.msra.mxu0 0.0
    %1730 = vmatprep.subr.mxu0 0.0
    %1731 = vmatpush2.msra.mxu0 0.0
    %1732 = vmatprep.subr.mxu0 0.0
    %1733 = vmatpush2.msra.mxu0 0.0
    %1734 = vmatprep.subr.mxu0 0.0
    %1735 = vmatpush2.msra.mxu0 0.0
    %1736 = vmatprep.subr.mxu0 0.0
    %1737 = vmatpush2.msra.mxu0 0.0
    %1738 = vmatprep.subr.mxu0 0.0
    %1739 = vmatpush2.msra.mxu0 0.0
    %1740 = vmatprep.subr.mxu0 0.0
    %1741 = vmatpush2.msra.mxu0 0.0
    %1742 = vmatprep.subr.mxu0 0.0
    %1743 = vmatpush2.msra.mxu0 0.0
    %1744 = vmatprep.subr.mxu0 0.0
    %1745 = vmatpush2.msra.mxu0 0.0
    %1746 = vmatprep.subr.mxu0 0.0
    %1747 = vmatpush2.msra.mxu0 0.0
    %1748 = vmatprep.subr.mxu0 0.0
    %1749 = vmatpush2.msra.mxu0 0.0
    %1750 = vmatprep.subr.mxu0 0.0
    %1751 = vmatpush2.msra.mxu0 0.0
    %1752 = vmatprep.subr.mxu0 0.0
    %1753 = vmatpush2.msra.mxu0 0.0
    %1754 = vmatprep.subr.mxu0 0.0
    %1755 = vmatpush2.msra.mxu0 0.0
    %1756 = vmatprep.subr.mxu0 0.0
    %1757 = vmatpush2.msra.mxu0 0.0
    %1758 = vmatprep.mubr.f32.mxu0 0.0
    %v1759 = vand.u32 %v1284, 4294901760
    %v1760 = vsub.f32 %v1284, %v1759
    %v1761 = vand.u32 %v1760, 4294901760
    %1762 = vmatmul.mubr.f32.gmra.mxu0 %v1761
    %v1763 = vpop.f32.mrf.mxu0
    %v1764 = vadd.f32 %v1668, %v1763
    %v1765 = vpop.f32.mrf.mxu0
    %1766 = vmatprep.mubr.f32.mxu0 0.0
    %v1767 = vand.u32 %v1285, 4294901760
    %v1768 = vsub.f32 %v1285, %v1767
    %v1769 = vand.u32 %v1768, 4294901760
    %1770 = vmatmul.mubr.f32.gmra.mxu0 %v1769
    %v1771 = vpop.f32.mrf.mxu0
    %v1772 = vadd.f32 %v1675, %v1771
    %v1773 = vpop.f32.mrf.mxu0
    %1774 = vdwg.mxu0
    %1775 = vmatprep.subr.mxu0 0.0
    %v1776 = vand.u32 %v1301, 4294901760
    %v1777 = vsub.f32 %v1301, %v1776
    %v1778 = vand.u32 %v1777, 4294901760
    %1779 = vmatpush1.msra.mxu0 %v1778
    %1780 = vmatprep.subr.mxu0 0.0
    %v1781 = vand.u32 %v1300, 4294901760
    %v1782 = vsub.f32 %v1300, %v1781
    %v1783 = vand.u32 %v1782, 4294901760
    %1784 = vmatpush1.msra.mxu0 %v1783
    %1785 = vmatprep.subr.mxu0 0.0
    %v1786 = vand.u32 %v1299, 4294901760
    %v1787 = vsub.f32 %v1299, %v1786
    %v1788 = vand.u32 %v1787, 4294901760
    %1789 = vmatpush1.msra.mxu0 %v1788
    %1790 = vmatprep.subr.mxu0 0.0
    %v1791 = vand.u32 %v1298, 4294901760
    %v1792 = vsub.f32 %v1298, %v1791
    %v1793 = vand.u32 %v1792, 4294901760
    %1794 = vmatpush1.msra.mxu0 %v1793
    %1795 = vmatprep.subr.mxu0 0.0
    %v1796 = vand.u32 %v1297, 4294901760
    %v1797 = vsub.f32 %v1297, %v1796
    %v1798 = vand.u32 %v1797, 4294901760
    %1799 = vmatpush1.msra.mxu0 %v1798
    %1800 = vmatprep.subr.mxu0 0.0
    %v1801 = vand.u32 %v1296, 4294901760
    %v1802 = vsub.f32 %v1296, %v1801
    %v1803 = vand.u32 %v1802, 4294901760
    %1804 = vmatpush1.msra.mxu0 %v1803
    %1805 = vmatprep.subr.mxu0 0.0
    %v1806 = vand.u32 %v1295, 4294901760
    %v1807 = vsub.f32 %v1295, %v1806
    %v1808 = vand.u32 %v1807, 4294901760
    %1809 = vmatpush1.msra.mxu0 %v1808
    %1810 = vmatprep.subr.mxu0 0.0
    %v1811 = vand.u32 %v1294, 4294901760
    %v1812 = vsub.f32 %v1294, %v1811
    %v1813 = vand.u32 %v1812, 4294901760
    %1814 = vmatpush1.msra.mxu0 %v1813
    %1815 = vmatprep.subr.mxu0 0.0
    %v1816 = vand.u32 %v1293, 4294901760
    %v1817 = vsub.f32 %v1293, %v1816
    %v1818 = vand.u32 %v1817, 4294901760
    %1819 = vmatpush1.msra.mxu0 %v1818
    %1820 = vmatprep.subr.mxu0 0.0
    %v1821 = vand.u32 %v1292, 4294901760
    %v1822 = vsub.f32 %v1292, %v1821
    %v1823 = vand.u32 %v1822, 4294901760
    %1824 = vmatpush1.msra.mxu0 %v1823
    %1825 = vmatprep.subr.mxu0 0.0
    %v1826 = vand.u32 %v1291, 4294901760
    %v1827 = vsub.f32 %v1291, %v1826
    %v1828 = vand.u32 %v1827, 4294901760
    %1829 = vmatpush1.msra.mxu0 %v1828
    %1830 = vmatprep.subr.mxu0 0.0
    %v1831 = vand.u32 %v1290, 4294901760
    %v1832 = vsub.f32 %v1290, %v1831
    %v1833 = vand.u32 %v1832, 4294901760
    %1834 = vmatpush1.msra.mxu0 %v1833
    %1835 = vmatprep.subr.mxu0 0.0
    %v1836 = vand.u32 %v1289, 4294901760
    %v1837 = vsub.f32 %v1289, %v1836
    %v1838 = vand.u32 %v1837, 4294901760
    %1839 = vmatpush1.msra.mxu0 %v1838
    %1840 = vmatprep.subr.mxu0 0.0
    %v1841 = vand.u32 %v1288, 4294901760
    %v1842 = vsub.f32 %v1288, %v1841
    %v1843 = vand.u32 %v1842, 4294901760
    %1844 = vmatpush1.msra.mxu0 %v1843
    %1845 = vmatprep.subr.mxu0 0.0
    %v1846 = vand.u32 %v1287, 4294901760
    %v1847 = vsub.f32 %v1287, %v1846
    %v1848 = vand.u32 %v1847, 4294901760
    %1849 = vmatpush1.msra.mxu0 %v1848
    %1850 = vmatprep.subr.mxu0 0.0
    %v1851 = vand.u32 %v1286, 4294901760
    %v1852 = vsub.f32 %v1286, %v1851
    %v1853 = vand.u32 %v1852, 4294901760
    %1854 = vmatpush1.msra.mxu0 %v1853
    %1855 = vmatprep.subr.mxu0 0.0
    %1856 = vmatpush2.msra.mxu0 0.0
    %1857 = vmatprep.subr.mxu0 0.0
    %1858 = vmatpush2.msra.mxu0 0.0
    %1859 = vmatprep.subr.mxu0 0.0
    %1860 = vmatpush2.msra.mxu0 0.0
    %1861 = vmatprep.subr.mxu0 0.0
    %1862 = vmatpush2.msra.mxu0 0.0
    %1863 = vmatprep.subr.mxu0 0.0
    %1864 = vmatpush2.msra.mxu0 0.0
    %1865 = vmatprep.subr.mxu0 0.0
    %1866 = vmatpush2.msra.mxu0 0.0
    %1867 = vmatprep.subr.mxu0 0.0
    %1868 = vmatpush2.msra.mxu0 0.0
    %1869 = vmatprep.subr.mxu0 0.0
    %1870 = vmatpush2.msra.mxu0 0.0
    %1871 = vmatprep.subr.mxu0 0.0
    %1872 = vmatpush2.msra.mxu0 0.0
    %1873 = vmatprep.subr.mxu0 0.0
    %1874 = vmatpush2.msra.mxu0 0.0
    %1875 = vmatprep.subr.mxu0 0.0
    %1876 = vmatpush2.msra.mxu0 0.0
    %1877 = vmatprep.subr.mxu0 0.0
    %1878 = vmatpush2.msra.mxu0 0.0
    %1879 = vmatprep.subr.mxu0 0.0
    %1880 = vmatpush2.msra.mxu0 0.0
    %1881 = vmatprep.subr.mxu0 0.0
    %1882 = vmatpush2.msra.mxu0 0.0
    %1883 = vmatprep.subr.mxu0 0.0
    %1884 = vmatpush2.msra.mxu0 0.0
    %1885 = vmatprep.subr.mxu0 0.0
    %1886 = vmatpush2.msra.mxu0 0.0
    %1887 = vmatprep.mubr.f32.mxu0 0.0
    %v1888 = vand.u32 %v1284, 4294901760
    %1889 = vmatmul.mubr.f32.gmra.mxu0 %v1888
    %v1890 = vpop.f32.mrf.mxu0
    %v1891 = vadd.f32 %v1764, %v1890
    %v1892 = vpop.f32.mrf.mxu0
    %1893 = vmatprep.mubr.f32.mxu0 0.0
    %v1894 = vand.u32 %v1285, 4294901760
    %1895 = vmatmul.mubr.f32.gmra.mxu0 %v1894
    %v1896 = vpop.f32.mrf.mxu0
    %v1897 = vadd.f32 %v1772, %v1896
    %v1898 = vpop.f32.mrf.mxu0
    %1899 = vdwg.mxu0
    %1900 = vmatprep.subr.mxu0 0.0
    %v1901 = vand.u32 %v1301, 4294901760
    %1902 = vmatpush1.msra.mxu0 %v1901
    %1903 = vmatprep.subr.mxu0 0.0
    %v1904 = vand.u32 %v1300, 4294901760
    %1905 = vmatpush1.msra.mxu0 %v1904
    %1906 = vmatprep.subr.mxu0 0.0
    %v1907 = vand.u32 %v1299, 4294901760
    %1908 = vmatpush1.msra.mxu0 %v1907
    %1909 = vmatprep.subr.mxu0 0.0
    %v1910 = vand.u32 %v1298, 4294901760
    %1911 = vmatpush1.msra.mxu0 %v1910
    %1912 = vmatprep.subr.mxu0 0.0
    %v1913 = vand.u32 %v1297, 4294901760
    %1914 = vmatpush1.msra.mxu0 %v1913
    %1915 = vmatprep.subr.mxu0 0.0
    %v1916 = vand.u32 %v1296, 4294901760
    %1917 = vmatpush1.msra.mxu0 %v1916
    %1918 = vmatprep.subr.mxu0 0.0
    %v1919 = vand.u32 %v1295, 4294901760
    %1920 = vmatpush1.msra.mxu0 %v1919
    %1921 = vmatprep.subr.mxu0 0.0
    %v1922 = vand.u32 %v1294, 4294901760
    %1923 = vmatpush1.msra.mxu0 %v1922
    %1924 = vmatprep.subr.mxu0 0.0
    %v1925 = vand.u32 %v1293, 4294901760
    %1926 = vmatpush1.msra.mxu0 %v1925
    %1927 = vmatprep.subr.mxu0 0.0
    %v1928 = vand.u32 %v1292, 4294901760
    %1929 = vmatpush1.msra.mxu0 %v1928
    %1930 = vmatprep.subr.mxu0 0.0
    %v1931 = vand.u32 %v1291, 4294901760
    %1932 = vmatpush1.msra.mxu0 %v1931
    %1933 = vmatprep.subr.mxu0 0.0
    %v1934 = vand.u32 %v1290, 4294901760
    %1935 = vmatpush1.msra.mxu0 %v1934
    %1936 = vmatprep.subr.mxu0 0.0
    %v1937 = vand.u32 %v1289, 4294901760
    %1938 = vmatpush1.msra.mxu0 %v1937
    %1939 = vmatprep.subr.mxu0 0.0
    %v1940 = vand.u32 %v1288, 4294901760
    %1941 = vmatpush1.msra.mxu0 %v1940
    %1942 = vmatprep.subr.mxu0 0.0
    %v1943 = vand.u32 %v1287, 4294901760
    %1944 = vmatpush1.msra.mxu0 %v1943
    %1945 = vmatprep.subr.mxu0 0.0
    %v1946 = vand.u32 %v1286, 4294901760
    %1947 = vmatpush1.msra.mxu0 %v1946
    %1948 = vmatprep.subr.mxu0 0.0
    %1949 = vmatpush2.msra.mxu0 0.0
    %1950 = vmatprep.subr.mxu0 0.0
    %1951 = vmatpush2.msra.mxu0 0.0
    %1952 = vmatprep.subr.mxu0 0.0
    %1953 = vmatpush2.msra.mxu0 0.0
    %1954 = vmatprep.subr.mxu0 0.0
    %1955 = vmatpush2.msra.mxu0 0.0
    %1956 = vmatprep.subr.mxu0 0.0
    %1957 = vmatpush2.msra.mxu0 0.0
    %1958 = vmatprep.subr.mxu0 0.0
    %1959 = vmatpush2.msra.mxu0 0.0
    %1960 = vmatprep.subr.mxu0 0.0
    %1961 = vmatpush2.msra.mxu0 0.0
    %1962 = vmatprep.subr.mxu0 0.0
    %1963 = vmatpush2.msra.mxu0 0.0
    %1964 = vmatprep.subr.mxu0 0.0
    %1965 = vmatpush2.msra.mxu0 0.0
    %1966 = vmatprep.subr.mxu0 0.0
    %1967 = vmatpush2.msra.mxu0 0.0
    %1968 = vmatprep.subr.mxu0 0.0
    %1969 = vmatpush2.msra.mxu0 0.0
    %1970 = vmatprep.subr.mxu0 0.0
    %1971 = vmatpush2.msra.mxu0 0.0
    %1972 = vmatprep.subr.mxu0 0.0
    %1973 = vmatpush2.msra.mxu0 0.0
    %1974 = vmatprep.subr.mxu0 0.0
    %1975 = vmatpush2.msra.mxu0 0.0
    %1976 = vmatprep.subr.mxu0 0.0
    %1977 = vmatpush2.msra.mxu0 0.0
    %1978 = vmatprep.subr.mxu0 0.0
    %1979 = vmatpush2.msra.mxu0 0.0
    %1980 = vmatprep.mubr.f32.mxu0 0.0
    %v1981 = vand.u32 %v1284, 4294901760
    %1982 = vmatmul.mubr.f32.gmra.mxu0 %v1981
    %v1983 = vpop.f32.mrf.mxu0
    %v1984 = vadd.f32 %v1891, %v1983
    %v1985 = vpop.f32.mrf.mxu0
    %1986 = vmatprep.mubr.f32.mxu0 0.0
    %v1987 = vand.u32 %v1285, 4294901760
    %1988 = vmatmul.mubr.f32.gmra.mxu0 %v1987
    %v1989 = vpop.f32.mrf.mxu0
    %v1990 = vadd.f32 %v1897, %v1989
    %v1991 = vpop.f32.mrf.mxu0
    %1992 = vdwg.mxu0
    %vm1993 = vcmask 130048
    %1994 = vst.msk [vmem:[#allocation2] sm:$0xff] %vm1993, %v1984
    %1995 = vst.msk [vmem:[#allocation2 + $0x8] sm:$0xff] %vm1993, %v1990
    // Predicated region
    $region30: #{inlier_decoder_forward.1} parent=1 // pred_check
      _
    $region31: #{inlier_decoder_forward.1} parent=1 // pred_check_branch
      %1997 = sbr.rel (0) target = $region33
    $region32: #{inlier_decoder_forward.1} parent=1 // pred_region
      %s1999 = ssub.s32 256, 256
      %2000 = vsyncadd [#allocation3], %s1999
      %s2001 = sshll.u32 [#allocation2], 4
      %s2002 = int_to_ptr.vmem [resolvable:$true] %s2001
      %2007 = dma.vmem_to_hbm [thread:$0]  %s2002, 256, %s7, [#allocation3], 128, 128, 8
    $region33: #{inlier_decoder_forward.1} parent=1 // pred_fallthru
      _
    // Predicated region
    $region34: #{inlier_decoder_forward.1} parent=1 // pred_check
      _
    $region35: #{inlier_decoder_forward.1} parent=1 // pred_check_branch
      %2009 = sbr.rel (0) target = $region37
    $region36: #{inlier_decoder_forward.1} parent=1 // pred_region
      %2010 = dma.done [#allocation3], 256
    $region37: #{inlier_decoder_forward.1} parent=1 // pred_fallthru
      _
    %2011 = vsyncpa [#allocation3], 1

</llo_original>
